<compile_context>
chip_gen: v7x
topology: tpu7x:2x2x1
jax: 0.10.0
libtpu: 0.0.40
codegen_flags: <defaults>
</compile_context>

<pallas_src>
import jax
import jax.numpy as jnp
from jax.experimental import pallas as pl
from jax.experimental.pallas import tpu as pltpu


def _softplus(x):
    # numerically stable softplus: log1p(exp(-|x|)) + max(x, 0)
    return jnp.log1p(jnp.exp(-jnp.abs(x))) + jnp.maximum(x, 0.0)


# --------------------------------------------------------------------------
# Small-C kernel: VPU FMAs, weights in SMEM, lane/sublane-dense activations.
# Block shapes: y/f/r -> (C, TS, 128), out -> (AR, 128) per batch element.
# --------------------------------------------------------------------------
def dim_loss_kernel_vpu(y_ref, f_ref, r_ref,
                        w0i_ref, w0f_ref, b0_ref,
                        w2_ref, b2_ref, w1_ref, b1_ref,
                        out_ref):
    C, TS, _ = y_ref.shape
    t = pl.program_id(1)

    @pl.when(t == 0)
    def _init():
        out_ref[...] = jnp.zeros_like(out_ref)

    f32 = jnp.float32
    # Each channel slab is a contiguous, fully dense (TS, 128) block.
    y_rows = [y_ref[c].astype(f32) for c in range(C)]
    f_rows = [f_ref[c].astype(f32) for c in range(C)]
    r_rows = [r_ref[c].astype(f32) for c in range(C)]

    def matvec(w_ref, rows, b_ref=None):
        # (C_out, C_in) weights in SMEM; unrolled scalar-broadcast FMAs (VPU).
        out = []
        for o in range(C):
            acc = w_ref[o, 0] * rows[0]
            for c in range(1, C):
                acc = acc + w_ref[o, c] * rows[c]
            if b_ref is not None:
                acc = acc + b_ref[o]
            out.append(acc)
        return out

    # Shared projection W0_i @ y + b0 -- hoisted, computed once per tile.
    yi = matvec(w0i_ref, y_rows, b0_ref)
    b1 = b1_ref[0]

    def branch(rows):
        z = matvec(w0f_ref, rows)
        h1 = [jnp.maximum(yi[o] + z[o], 0.0) for o in range(C)]
        h2 = [jnp.maximum(v, 0.0) for v in matvec(w2_ref, h1, b2_ref)]
        s = w1_ref[0] * h2[0]
        for c in range(1, C):
            s = s + w1_ref[c] * h2[c]
        return s + b1

    s_f = branch(f_rows)
    s_r = branch(r_rows)

    part = _softplus(-s_r) + 0.1 * _softplus(s_f)        # (TS, 128)

    # Lane-dense accumulation: fold sublane groups with vreg adds only.
    if TS % 8 == 0 and TS > 8:
        folded = part[0:8, :]
        for i in range(1, TS // 8):
            folded = folded + part[i * 8:(i + 1) * 8, :]
    else:
        folded = part                                     # (TS, 128), TS full extent

    out_ref[...] += folded


# --------------------------------------------------------------------------
# Large-C fallback: MXU matmuls, weights resident in VMEM.
# Block shapes: y/f/r -> (C, TP), out -> (1, 1) per batch element.
# --------------------------------------------------------------------------
def dim_loss_kernel_mxu(y_ref, f_ref, r_ref,
                        w0i_ref, w0f_ref, b0_ref,
                        w2_ref, b2_ref, w1_ref, b1_ref,
                        out_ref):
    t = pl.program_id(1)

    @pl.when(t == 0)
    def _init():
        out_ref[...] = jnp.zeros_like(out_ref)

    y = y_ref[...].astype(jnp.float32)
    w0i = w0i_ref[...]
    w0f = w0f_ref[...]
    b0 = b0_ref[...]
    w2 = w2_ref[...]
    b2 = b2_ref[...]
    w1 = w1_ref[...]
    b1 = b1_ref[0]

    yi = jnp.dot(w0i, y, preferred_element_type=jnp.float32) + b0

    def branch(other):
        h = jnp.maximum(
            yi + jnp.dot(w0f, other.astype(jnp.float32),
                         preferred_element_type=jnp.float32), 0.0)
        h = jnp.maximum(
            jnp.dot(w2, h, preferred_element_type=jnp.float32) + b2, 0.0)
        # 1-output-channel conv as VPU mul + sublane reduce -> (1, TP)
        return jnp.sum(h * w1, axis=0, keepdims=True) + b1

    s_f = branch(f_ref[...])
    s_r = branch(r_ref[...])
    out_ref[...] += jnp.sum(_softplus(-s_r) + 0.1 * _softplus(s_f))


# --------------------------------------------------------------------------
# Tile sizing from the per-generation VMEM budget.
# --------------------------------------------------------------------------
def _vmem_budget_bytes():
    cap = None
    try:
        info = pltpu.get_tpu_info()
        cap = getattr(info, "vmem_capacity_bytes", None)
    except Exception:
        cap = None
    if not cap:
        cap = 64 << 20                     # conservative (v7x-sized) default
    # ~48 MiB usable on 64 MiB parts (v7x); cap at ~100 MiB on 128 MiB parts.
    return int(min(cap * 3 // 4, 100 << 20))


def _pick_ts(hw_blocks, c, dtype_bytes, budget_bytes):
    """Rows of 128 pixels per tile; multiple of 8, dividing hw_blocks, or full."""
    per_pixel = 6 * c * dtype_bytes        # 3 streams x 2 pipeline buffers
    max_ts = max(budget_bytes // per_pixel, 1024) // 128
    if hw_blocks <= max_ts:
        return hw_blocks                   # whole image per grid step
    ts = (max_ts // 8) * 8
    while ts >= 8:
        if hw_blocks % ts == 0:
            return ts
        ts -= 8
    return hw_blocks


def _pick_tp(hw, c, dtype_bytes, budget_bytes):
    """Pixels per tile for the MXU path; multiple of 128 dividing hw, or full."""
    per_pixel = 6 * c * dtype_bytes
    max_tp = max(budget_bytes // per_pixel, 1024)
    if hw <= max_tp or hw % 128 != 0:
        return hw
    tp = (min(max_tp, hw) // 128) * 128
    while tp >= 128:
        if hw % tp == 0:
            return tp
        tp -= 128
    return hw


# --------------------------------------------------------------------------
# Wrapper
# --------------------------------------------------------------------------
def deep_infomax_loss(x, y, f, r, params):
    """x is unused by the forward (matches the PyTorch module). Returns scalar."""
    del x
    N, C, H, W = y.shape
    HW = H * W
    P = N * HW
    w0i, w0f, b0, w2, b2, w1, b1 = params
    db = jnp.dtype(y.dtype).itemsize
    budget = _vmem_budget_bytes()

    if C < 64 and HW % 128 == 0:
        # ---- small-C VPU path (lane/sublane-dense (N, C, HW/128, 128)) ----
        HWd = HW // 128
        TS = _pick_ts(HWd, C, db, budget)
        AR = 8 if TS % 8 == 0 else TS

        y4 = y.reshape(N, C, HWd, 128)     # free reshape, pixels on lanes
        f4 = f.reshape(N, C, HWd, 128)
        r4 = r.reshape(N, C, HWd, 128)

        grid = (N, HWd // TS)
        act = pl.BlockSpec((None, C, TS, 128), lambda n, t: (n, 0, t, 0))
        smem = pl.BlockSpec(memory_space=pltpu.MemorySpace.SMEM)

        cost = pl.CostEstimate(
            flops=int(P * (10 * C * C + 20 * C)),
            transcendentals=int(4 * P),
            bytes_accessed=int(3 * P * C * db + N * AR * 128 * 4
                               + (3 * C * C + 3 * C + 1) * 4),
        )

        out = pl.pallas_call(
            dim_loss_kernel_vpu,
            out_shape=jax.ShapeDtypeStruct((N, AR, 128), jnp.float32),
            grid=grid,
            in_specs=[act, act, act] + [smem] * 7,
            out_specs=pl.BlockSpec((None, AR, 128), lambda n, t: (n, 0, 0)),
            compiler_params=pltpu.CompilerParams(
                dimension_semantics=("parallel", "arbitrary"),
                vmem_limit_bytes=int(budget),
            ),
            cost_estimate=cost,
        )(y4, f4, r4,
          w0i, w0f, b0.reshape(C), w2, b2.reshape(C), w1.reshape(C),
          b1.reshape(1))
        return jnp.sum(out) / P

    # ---- large-C (or lane-unaligned HW) MXU path ----
    y3 = y.reshape(N, C, HW)
    f3 = f.reshape(N, C, HW)
    r3 = r.reshape(N, C, HW)

    w_bytes = (3 * C * C + 2 * C) * 4 * 2          # resident weights (x2 buffers)
    TP = _pick_tp(HW, C, db, max(budget - w_bytes, 8 << 20))
    grid = (N, HW // TP)

    act = pl.BlockSpec((None, C, TP), lambda n, t: (n, 0, t))
    res = lambda shape: pl.BlockSpec(shape, lambda n, t: (0, 0))  # resident weights

    cost = pl.CostEstimate(
        flops=int(P * (10 * C * C + 20 * C)),
        transcendentals=int(4 * P),
        bytes_accessed=int(3 * P * C * db + N * 4 + (3 * C * C + 3 * C + 1) * 4),
    )

    out = pl.pallas_call(
        dim_loss_kernel_mxu,
        out_shape=jax.ShapeDtypeStruct((N, 1, 1), jnp.float32),
        grid=grid,
        in_specs=[act, act, act,
                  res((C, C)), res((C, C)), res((C, 1)),
                  res((C, C)), res((C, 1)), res((C, 1)),
                  pl.BlockSpec(memory_space=pltpu.MemorySpace.SMEM)],
        out_specs=pl.BlockSpec((None, 1, 1), lambda n, t: (n, 0, 0)),
        compiler_params=pltpu.CompilerParams(
            dimension_semantics=("parallel", "arbitrary"),
            vmem_limit_bytes=int(budget),
        ),
        cost_estimate=cost,
    )(y3, f3, r3,
      w0i, w0f, b0.reshape(C, 1), w2, b2.reshape(C, 1), w1.reshape(C, 1),
      b1.reshape(1))
    return jnp.sum(out) / P


# --------------------------------------------------------------------------
# Parameters + reference
# --------------------------------------------------------------------------
def init_params(key, input_size):
    """Synthetic parameters matching the nn.Conv2d (1x1) shapes.

    a0: Conv2d(2C, C, 1) -> weight (C, 2C), bias (C,)
    a2: Conv2d(C, C, 1)  -> weight (C, C),  bias (C,)
    a1: Conv2d(C, 1, 1)  -> weight (1, C),  bias (1,)
    a0's weight is split on its input-channel axis so cat((i, f), dim=1)
    becomes  W0_i @ y + W0_f @ f.
    """
    C = input_size
    k = jax.random.split(key, 6)
    w0 = jax.random.uniform(k[0], (C, 2 * C), jnp.float32, -0.5, 0.5)
    b0 = jax.random.uniform(k[1], (C,), jnp.float32, -0.5, 0.5)
    w2 = jax.random.uniform(k[2], (C, C), jnp.float32, -0.5, 0.5)
    b2 = jax.random.uniform(k[3], (C,), jnp.float32, -0.5, 0.5)
    w1 = jax.random.uniform(k[4], (C,), jnp.float32, -0.5, 0.5)
    b1 = jax.random.uniform(k[5], (1,), jnp.float32, -0.5, 0.5)
    w0i = w0[:, :C]      # acts on i = y
    w0f = w0[:, C:]      # acts on f (or r)
    return (w0i, w0f, b0, w2, b2, w1, b1)


def reference_loss(y, f, r, params):
    """Plain-JAX reference (same math as the PyTorch forward)."""
    w0i, w0f, b0, w2, b2, w1, b1 = params
    N, C, H, W = y.shape
    yp = y.reshape(N, C, -1).astype(jnp.float32)
    fp = f.reshape(N, C, -1).astype(jnp.float32)
    rp = r.reshape(N, C, -1).astype(jnp.float32)

    yi = jnp.einsum('oc,ncp->nop', w0i, yp) + b0[None, :, None]

    def branch(other):
        h = jax.nn.relu(yi + jnp.einsum('oc,ncp->nop', w0f, other))
        h = jax.nn.relu(jnp.einsum('oc,ncp->nop', w2, h) + b2[None, :, None])
        return jnp.einsum('c,ncp->np', w1, h) + b1[0]

    s_f, s_r = branch(fp), branch(rp)
    return jnp.mean(jax.nn.softplus(-s_r)) * 1.0 + jnp.mean(jax.nn.softplus(s_f)) * 0.1


if __name__ == "__main__":
    key = jax.random.PRNGKey(0)
    k_param, ky, kf, kr, kx = jax.random.split(key, 5)

    input_size = 4          # C
    N, H, W = 2, 16, 16

    params = init_params(k_param, input_size)

    x = jax.random.normal(kx, (N, input_size, H, W), jnp.float32)  # unused by forward
    y = jax.random.normal(ky, (N, input_size, H, W), jnp.float32)
    f = jax.random.normal(kf, (N, input_size, H, W), jnp.float32)
    r = jax.random.normal(kr, (N, input_size, H, W), jnp.float32)

    loss = jax.block_until_ready(deep_infomax_loss(x, y, f, r, params))
    ref = jax.block_until_ready(reference_loss(y, f, r, params))
    assert jnp.allclose(loss, ref, atol=1e-5, rtol=1e-4), (loss, ref)

    print("KERNEL_OK")
</pallas_src>

<mosaic_0001>
module attributes {stable_mosaic.version = 11 : i64} {
  func.func @dim_loss_kernel_vpu(%arg0: i32, %arg1: i32, %arg2: memref<1x4x2x128xf32, #tpu.memory_space<vmem>>, %arg3: memref<1x4x2x128xf32, #tpu.memory_space<vmem>>, %arg4: memref<1x4x2x128xf32, #tpu.memory_space<vmem>>, %arg5: memref<4x4xf32, #tpu.memory_space<smem>>, %arg6: memref<4x4xf32, #tpu.memory_space<smem>>, %arg7: memref<4xf32, #tpu.memory_space<smem>>, %arg8: memref<4x4xf32, #tpu.memory_space<smem>>, %arg9: memref<4xf32, #tpu.memory_space<smem>>, %arg10: memref<4xf32, #tpu.memory_space<smem>>, %arg11: memref<1xf32, #tpu.memory_space<smem>>, %arg12: memref<1x2x128xf32, #tpu.memory_space<vmem>>) attributes {dimension_semantics = [#tpu.dimension_semantics<parallel>, #tpu.dimension_semantics<arbitrary>], iteration_bounds = array<i64: 2, 1>, scalar_prefetch = 0 : i64, scratch_operands = 0 : i64, tpu.core_type = #tpu.core_type<tc>, window_params = [{transform_indices = @transform_0, window_bounds = array<i64: 1, 4, 2, 128>}, {transform_indices = @transform_1, window_bounds = array<i64: 1, 4, 2, 128>}, {transform_indices = @transform_2, window_bounds = array<i64: 1, 4, 2, 128>}, {transform_indices = @transform_3, window_bounds = array<i64: 4, 4>}, {transform_indices = @transform_4, window_bounds = array<i64: 4, 4>}, {transform_indices = @transform_5, window_bounds = array<i64: 4>}, {transform_indices = @transform_6, window_bounds = array<i64: 4, 4>}, {transform_indices = @transform_7, window_bounds = array<i64: 4>}, {transform_indices = @transform_8, window_bounds = array<i64: 4>}, {transform_indices = @transform_9, window_bounds = array<i64: 1>}, {transform_indices = @transform_10, window_bounds = array<i64: 1, 2, 128>}]} {
    %c0_i32 = arith.constant 0 : i32
    %0 = arith.cmpi eq, %arg1, %c0_i32 : i32
    %1 = arith.extui %0 : i1 to i32
    %c0_i32_0 = arith.constant 0 : i32
    %2 = arith.cmpi ne, %1, %c0_i32_0 : i32
    scf.if %2 {
      %cst_253 = arith.constant 0.000000e+00 : f32
      %465 = vector.broadcast %cst_253 : f32 to vector<2x128xf32>
      %c0_254 = arith.constant 0 : index
      %c0_255 = arith.constant 0 : index
      %c0_256 = arith.constant 0 : index
      %466 = vector.load %arg12[%c0_254, %c0_255, %c0_256] : memref<1x2x128xf32, #tpu.memory_space<vmem>>, vector<1x2x128xf32>
      %467 = vector.shape_cast %466 : vector<1x2x128xf32> to vector<2x128xf32>
      %468 = vector.shape_cast %465 : vector<2x128xf32> to vector<1x2x128xf32>
      tpu.vector_store %arg12[%c0_254, %c0_255, %c0_256], %468 {strides = array<i32>} : memref<1x2x128xf32, #tpu.memory_space<vmem>>, vector<1x2x128xf32>,
    } else {
    }
    %c0 = arith.constant 0 : index
    %c0_1 = arith.constant 0 : index
    %c0_2 = arith.constant 0 : index
    %c0_3 = arith.constant 0 : index
    %3 = vector.load %arg2[%c0, %c0_1, %c0_2, %c0_3] : memref<1x4x2x128xf32, #tpu.memory_space<vmem>>, vector<1x1x2x128xf32>
    %4 = vector.shape_cast %3 : vector<1x1x2x128xf32> to vector<2x128xf32>
    %c0_4 = arith.constant 0 : index
    %c1 = arith.constant 1 : index
    %c0_5 = arith.constant 0 : index
    %c0_6 = arith.constant 0 : index
    %5 = vector.load %arg2[%c0_4, %c1, %c0_5, %c0_6] : memref<1x4x2x128xf32, #tpu.memory_space<vmem>>, vector<1x1x2x128xf32>
    %6 = vector.shape_cast %5 : vector<1x1x2x128xf32> to vector<2x128xf32>
    %c0_7 = arith.constant 0 : index
    %c2 = arith.constant 2 : index
    %c0_8 = arith.constant 0 : index
    %c0_9 = arith.constant 0 : index
    %7 = vector.load %arg2[%c0_7, %c2, %c0_8, %c0_9] : memref<1x4x2x128xf32, #tpu.memory_space<vmem>>, vector<1x1x2x128xf32>
    %8 = vector.shape_cast %7 : vector<1x1x2x128xf32> to vector<2x128xf32>
    %c0_10 = arith.constant 0 : index
    %c3 = arith.constant 3 : index
    %c0_11 = arith.constant 0 : index
    %c0_12 = arith.constant 0 : index
    %9 = vector.load %arg2[%c0_10, %c3, %c0_11, %c0_12] : memref<1x4x2x128xf32, #tpu.memory_space<vmem>>, vector<1x1x2x128xf32>
    %10 = vector.shape_cast %9 : vector<1x1x2x128xf32> to vector<2x128xf32>
    %c0_13 = arith.constant 0 : index
    %c0_14 = arith.constant 0 : index
    %c0_15 = arith.constant 0 : index
    %c0_16 = arith.constant 0 : index
    %11 = vector.load %arg3[%c0_13, %c0_14, %c0_15, %c0_16] : memref<1x4x2x128xf32, #tpu.memory_space<vmem>>, vector<1x1x2x128xf32>
    %12 = vector.shape_cast %11 : vector<1x1x2x128xf32> to vector<2x128xf32>
    %c0_17 = arith.constant 0 : index
    %c1_18 = arith.constant 1 : index
    %c0_19 = arith.constant 0 : index
    %c0_20 = arith.constant 0 : index
    %13 = vector.load %arg3[%c0_17, %c1_18, %c0_19, %c0_20] : memref<1x4x2x128xf32, #tpu.memory_space<vmem>>, vector<1x1x2x128xf32>
    %14 = vector.shape_cast %13 : vector<1x1x2x128xf32> to vector<2x128xf32>
    %c0_21 = arith.constant 0 : index
    %c2_22 = arith.constant 2 : index
    %c0_23 = arith.constant 0 : index
    %c0_24 = arith.constant 0 : index
    %15 = vector.load %arg3[%c0_21, %c2_22, %c0_23, %c0_24] : memref<1x4x2x128xf32, #tpu.memory_space<vmem>>, vector<1x1x2x128xf32>
    %16 = vector.shape_cast %15 : vector<1x1x2x128xf32> to vector<2x128xf32>
    %c0_25 = arith.constant 0 : index
    %c3_26 = arith.constant 3 : index
    %c0_27 = arith.constant 0 : index
    %c0_28 = arith.constant 0 : index
    %17 = vector.load %arg3[%c0_25, %c3_26, %c0_27, %c0_28] : memref<1x4x2x128xf32, #tpu.memory_space<vmem>>, vector<1x1x2x128xf32>
    %18 = vector.shape_cast %17 : vector<1x1x2x128xf32> to vector<2x128xf32>
    %c0_29 = arith.constant 0 : index
    %c0_30 = arith.constant 0 : index
    %c0_31 = arith.constant 0 : index
    %c0_32 = arith.constant 0 : index
    %19 = vector.load %arg4[%c0_29, %c0_30, %c0_31, %c0_32] : memref<1x4x2x128xf32, #tpu.memory_space<vmem>>, vector<1x1x2x128xf32>
    %20 = vector.shape_cast %19 : vector<1x1x2x128xf32> to vector<2x128xf32>
    %c0_33 = arith.constant 0 : index
    %c1_34 = arith.constant 1 : index
    %c0_35 = arith.constant 0 : index
    %c0_36 = arith.constant 0 : index
    %21 = vector.load %arg4[%c0_33, %c1_34, %c0_35, %c0_36] : memref<1x4x2x128xf32, #tpu.memory_space<vmem>>, vector<1x1x2x128xf32>
    %22 = vector.shape_cast %21 : vector<1x1x2x128xf32> to vector<2x128xf32>
    %c0_37 = arith.constant 0 : index
    %c2_38 = arith.constant 2 : index
    %c0_39 = arith.constant 0 : index
    %c0_40 = arith.constant 0 : index
    %23 = vector.load %arg4[%c0_37, %c2_38, %c0_39, %c0_40] : memref<1x4x2x128xf32, #tpu.memory_space<vmem>>, vector<1x1x2x128xf32>
    %24 = vector.shape_cast %23 : vector<1x1x2x128xf32> to vector<2x128xf32>
    %c0_41 = arith.constant 0 : index
    %c3_42 = arith.constant 3 : index
    %c0_43 = arith.constant 0 : index
    %c0_44 = arith.constant 0 : index
    %25 = vector.load %arg4[%c0_41, %c3_42, %c0_43, %c0_44] : memref<1x4x2x128xf32, #tpu.memory_space<vmem>>, vector<1x1x2x128xf32>
    %26 = vector.shape_cast %25 : vector<1x1x2x128xf32> to vector<2x128xf32>
    %c0_45 = arith.constant 0 : index
    %c0_46 = arith.constant 0 : index
    %27 = memref.load %arg5[%c0_45, %c0_46] : memref<4x4xf32, #tpu.memory_space<smem>>
    %28 = vector.broadcast %27 : f32 to vector<2x128xf32>
    %29 = arith.mulf %28, %4 : vector<2x128xf32>
    %c0_47 = arith.constant 0 : index
    %c1_48 = arith.constant 1 : index
    %30 = memref.load %arg5[%c0_47, %c1_48] : memref<4x4xf32, #tpu.memory_space<smem>>
    %31 = vector.broadcast %30 : f32 to vector<2x128xf32>
    %32 = arith.mulf %31, %6 : vector<2x128xf32>
    %33 = arith.addf %29, %32 : vector<2x128xf32>
    %c0_49 = arith.constant 0 : index
    %c2_50 = arith.constant 2 : index
    %34 = memref.load %arg5[%c0_49, %c2_50] : memref<4x4xf32, #tpu.memory_space<smem>>
    %35 = vector.broadcast %34 : f32 to vector<2x128xf32>
    %36 = arith.mulf %35, %8 : vector<2x128xf32>
    %37 = arith.addf %33, %36 : vector<2x128xf32>
    %c0_51 = arith.constant 0 : index
    %c3_52 = arith.constant 3 : index
    %38 = memref.load %arg5[%c0_51, %c3_52] : memref<4x4xf32, #tpu.memory_space<smem>>
    %39 = vector.broadcast %38 : f32 to vector<2x128xf32>
    %40 = arith.mulf %39, %10 : vector<2x128xf32>
    %41 = arith.addf %37, %40 : vector<2x128xf32>
    %c0_53 = arith.constant 0 : index
    %42 = memref.load %arg7[%c0_53] : memref<4xf32, #tpu.memory_space<smem>>
    %43 = vector.broadcast %42 : f32 to vector<2x128xf32>
    %44 = arith.addf %41, %43 : vector<2x128xf32>
    %c1_54 = arith.constant 1 : index
    %c0_55 = arith.constant 0 : index
    %45 = memref.load %arg5[%c1_54, %c0_55] : memref<4x4xf32, #tpu.memory_space<smem>>
    %46 = vector.broadcast %45 : f32 to vector<2x128xf32>
    %47 = arith.mulf %46, %4 : vector<2x128xf32>
    %c1_56 = arith.constant 1 : index
    %c1_57 = arith.constant 1 : index
    %48 = memref.load %arg5[%c1_56, %c1_57] : memref<4x4xf32, #tpu.memory_space<smem>>
    %49 = vector.broadcast %48 : f32 to vector<2x128xf32>
    %50 = arith.mulf %49, %6 : vector<2x128xf32>
    %51 = arith.addf %47, %50 : vector<2x128xf32>
    %c1_58 = arith.constant 1 : index
    %c2_59 = arith.constant 2 : index
    %52 = memref.load %arg5[%c1_58, %c2_59] : memref<4x4xf32, #tpu.memory_space<smem>>
    %53 = vector.broadcast %52 : f32 to vector<2x128xf32>
    %54 = arith.mulf %53, %8 : vector<2x128xf32>
    %55 = arith.addf %51, %54 : vector<2x128xf32>
    %c1_60 = arith.constant 1 : index
    %c3_61 = arith.constant 3 : index
    %56 = memref.load %arg5[%c1_60, %c3_61] : memref<4x4xf32, #tpu.memory_space<smem>>
    %57 = vector.broadcast %56 : f32 to vector<2x128xf32>
    %58 = arith.mulf %57, %10 : vector<2x128xf32>
    %59 = arith.addf %55, %58 : vector<2x128xf32>
    %c1_62 = arith.constant 1 : index
    %60 = memref.load %arg7[%c1_62] : memref<4xf32, #tpu.memory_space<smem>>
    %61 = vector.broadcast %60 : f32 to vector<2x128xf32>
    %62 = arith.addf %59, %61 : vector<2x128xf32>
    %c2_63 = arith.constant 2 : index
    %c0_64 = arith.constant 0 : index
    %63 = memref.load %arg5[%c2_63, %c0_64] : memref<4x4xf32, #tpu.memory_space<smem>>
    %64 = vector.broadcast %63 : f32 to vector<2x128xf32>
    %65 = arith.mulf %64, %4 : vector<2x128xf32>
    %c2_65 = arith.constant 2 : index
    %c1_66 = arith.constant 1 : index
    %66 = memref.load %arg5[%c2_65, %c1_66] : memref<4x4xf32, #tpu.memory_space<smem>>
    %67 = vector.broadcast %66 : f32 to vector<2x128xf32>
    %68 = arith.mulf %67, %6 : vector<2x128xf32>
    %69 = arith.addf %65, %68 : vector<2x128xf32>
    %c2_67 = arith.constant 2 : index
    %c2_68 = arith.constant 2 : index
    %70 = memref.load %arg5[%c2_67, %c2_68] : memref<4x4xf32, #tpu.memory_space<smem>>
    %71 = vector.broadcast %70 : f32 to vector<2x128xf32>
    %72 = arith.mulf %71, %8 : vector<2x128xf32>
    %73 = arith.addf %69, %72 : vector<2x128xf32>
    %c2_69 = arith.constant 2 : index
    %c3_70 = arith.constant 3 : index
    %74 = memref.load %arg5[%c2_69, %c3_70] : memref<4x4xf32, #tpu.memory_space<smem>>
    %75 = vector.broadcast %74 : f32 to vector<2x128xf32>
    %76 = arith.mulf %75, %10 : vector<2x128xf32>
    %77 = arith.addf %73, %76 : vector<2x128xf32>
    %c2_71 = arith.constant 2 : index
    %78 = memref.load %arg7[%c2_71] : memref<4xf32, #tpu.memory_space<smem>>
    %79 = vector.broadcast %78 : f32 to vector<2x128xf32>
    %80 = arith.addf %77, %79 : vector<2x128xf32>
    %c3_72 = arith.constant 3 : index
    %c0_73 = arith.constant 0 : index
    %81 = memref.load %arg5[%c3_72, %c0_73] : memref<4x4xf32, #tpu.memory_space<smem>>
    %82 = vector.broadcast %81 : f32 to vector<2x128xf32>
    %83 = arith.mulf %82, %4 : vector<2x128xf32>
    %c3_74 = arith.constant 3 : index
    %c1_75 = arith.constant 1 : index
    %84 = memref.load %arg5[%c3_74, %c1_75] : memref<4x4xf32, #tpu.memory_space<smem>>
    %85 = vector.broadcast %84 : f32 to vector<2x128xf32>
    %86 = arith.mulf %85, %6 : vector<2x128xf32>
    %87 = arith.addf %83, %86 : vector<2x128xf32>
    %c3_76 = arith.constant 3 : index
    %c2_77 = arith.constant 2 : index
    %88 = memref.load %arg5[%c3_76, %c2_77] : memref<4x4xf32, #tpu.memory_space<smem>>
    %89 = vector.broadcast %88 : f32 to vector<2x128xf32>
    %90 = arith.mulf %89, %8 : vector<2x128xf32>
    %91 = arith.addf %87, %90 : vector<2x128xf32>
    %c3_78 = arith.constant 3 : index
    %c3_79 = arith.constant 3 : index
    %92 = memref.load %arg5[%c3_78, %c3_79] : memref<4x4xf32, #tpu.memory_space<smem>>
    %93 = vector.broadcast %92 : f32 to vector<2x128xf32>
    %94 = arith.mulf %93, %10 : vector<2x128xf32>
    %95 = arith.addf %91, %94 : vector<2x128xf32>
    %c3_80 = arith.constant 3 : index
    %96 = memref.load %arg7[%c3_80] : memref<4xf32, #tpu.memory_space<smem>>
    %97 = vector.broadcast %96 : f32 to vector<2x128xf32>
    %98 = arith.addf %95, %97 : vector<2x128xf32>
    %c0_81 = arith.constant 0 : index
    %99 = memref.load %arg11[%c0_81] : memref<1xf32, #tpu.memory_space<smem>>
    %c0_82 = arith.constant 0 : index
    %c0_83 = arith.constant 0 : index
    %100 = memref.load %arg6[%c0_82, %c0_83] : memref<4x4xf32, #tpu.memory_space<smem>>
    %101 = vector.broadcast %100 : f32 to vector<2x128xf32>
    %102 = arith.mulf %101, %12 : vector<2x128xf32>
    %c0_84 = arith.constant 0 : index
    %c1_85 = arith.constant 1 : index
    %103 = memref.load %arg6[%c0_84, %c1_85] : memref<4x4xf32, #tpu.memory_space<smem>>
    %104 = vector.broadcast %103 : f32 to vector<2x128xf32>
    %105 = arith.mulf %104, %14 : vector<2x128xf32>
    %106 = arith.addf %102, %105 : vector<2x128xf32>
    %c0_86 = arith.constant 0 : index
    %c2_87 = arith.constant 2 : index
    %107 = memref.load %arg6[%c0_86, %c2_87] : memref<4x4xf32, #tpu.memory_space<smem>>
    %108 = vector.broadcast %107 : f32 to vector<2x128xf32>
    %109 = arith.mulf %108, %16 : vector<2x128xf32>
    %110 = arith.addf %106, %109 : vector<2x128xf32>
    %c0_88 = arith.constant 0 : index
    %c3_89 = arith.constant 3 : index
    %111 = memref.load %arg6[%c0_88, %c3_89] : memref<4x4xf32, #tpu.memory_space<smem>>
    %112 = vector.broadcast %111 : f32 to vector<2x128xf32>
    %113 = arith.mulf %112, %18 : vector<2x128xf32>
    %114 = arith.addf %110, %113 : vector<2x128xf32>
    %c1_90 = arith.constant 1 : index
    %c0_91 = arith.constant 0 : index
    %115 = memref.load %arg6[%c1_90, %c0_91] : memref<4x4xf32, #tpu.memory_space<smem>>
    %116 = vector.broadcast %115 : f32 to vector<2x128xf32>
    %117 = arith.mulf %116, %12 : vector<2x128xf32>
    %c1_92 = arith.constant 1 : index
    %c1_93 = arith.constant 1 : index
    %118 = memref.load %arg6[%c1_92, %c1_93] : memref<4x4xf32, #tpu.memory_space<smem>>
    %119 = vector.broadcast %118 : f32 to vector<2x128xf32>
    %120 = arith.mulf %119, %14 : vector<2x128xf32>
    %121 = arith.addf %117, %120 : vector<2x128xf32>
    %c1_94 = arith.constant 1 : index
    %c2_95 = arith.constant 2 : index
    %122 = memref.load %arg6[%c1_94, %c2_95] : memref<4x4xf32, #tpu.memory_space<smem>>
    %123 = vector.broadcast %122 : f32 to vector<2x128xf32>
    %124 = arith.mulf %123, %16 : vector<2x128xf32>
    %125 = arith.addf %121, %124 : vector<2x128xf32>
    %c1_96 = arith.constant 1 : index
    %c3_97 = arith.constant 3 : index
    %126 = memref.load %arg6[%c1_96, %c3_97] : memref<4x4xf32, #tpu.memory_space<smem>>
    %127 = vector.broadcast %126 : f32 to vector<2x128xf32>
    %128 = arith.mulf %127, %18 : vector<2x128xf32>
    %129 = arith.addf %125, %128 : vector<2x128xf32>
    %c2_98 = arith.constant 2 : index
    %c0_99 = arith.constant 0 : index
    %130 = memref.load %arg6[%c2_98, %c0_99] : memref<4x4xf32, #tpu.memory_space<smem>>
    %131 = vector.broadcast %130 : f32 to vector<2x128xf32>
    %132 = arith.mulf %131, %12 : vector<2x128xf32>
    %c2_100 = arith.constant 2 : index
    %c1_101 = arith.constant 1 : index
    %133 = memref.load %arg6[%c2_100, %c1_101] : memref<4x4xf32, #tpu.memory_space<smem>>
    %134 = vector.broadcast %133 : f32 to vector<2x128xf32>
    %135 = arith.mulf %134, %14 : vector<2x128xf32>
    %136 = arith.addf %132, %135 : vector<2x128xf32>
    %c2_102 = arith.constant 2 : index
    %c2_103 = arith.constant 2 : index
    %137 = memref.load %arg6[%c2_102, %c2_103] : memref<4x4xf32, #tpu.memory_space<smem>>
    %138 = vector.broadcast %137 : f32 to vector<2x128xf32>
    %139 = arith.mulf %138, %16 : vector<2x128xf32>
    %140 = arith.addf %136, %139 : vector<2x128xf32>
    %c2_104 = arith.constant 2 : index
    %c3_105 = arith.constant 3 : index
    %141 = memref.load %arg6[%c2_104, %c3_105] : memref<4x4xf32, #tpu.memory_space<smem>>
    %142 = vector.broadcast %141 : f32 to vector<2x128xf32>
    %143 = arith.mulf %142, %18 : vector<2x128xf32>
    %144 = arith.addf %140, %143 : vector<2x128xf32>
    %c3_106 = arith.constant 3 : index
    %c0_107 = arith.constant 0 : index
    %145 = memref.load %arg6[%c3_106, %c0_107] : memref<4x4xf32, #tpu.memory_space<smem>>
    %146 = vector.broadcast %145 : f32 to vector<2x128xf32>
    %147 = arith.mulf %146, %12 : vector<2x128xf32>
    %c3_108 = arith.constant 3 : index
    %c1_109 = arith.constant 1 : index
    %148 = memref.load %arg6[%c3_108, %c1_109] : memref<4x4xf32, #tpu.memory_space<smem>>
    %149 = vector.broadcast %148 : f32 to vector<2x128xf32>
    %150 = arith.mulf %149, %14 : vector<2x128xf32>
    %151 = arith.addf %147, %150 : vector<2x128xf32>
    %c3_110 = arith.constant 3 : index
    %c2_111 = arith.constant 2 : index
    %152 = memref.load %arg6[%c3_110, %c2_111] : memref<4x4xf32, #tpu.memory_space<smem>>
    %153 = vector.broadcast %152 : f32 to vector<2x128xf32>
    %154 = arith.mulf %153, %16 : vector<2x128xf32>
    %155 = arith.addf %151, %154 : vector<2x128xf32>
    %c3_112 = arith.constant 3 : index
    %c3_113 = arith.constant 3 : index
    %156 = memref.load %arg6[%c3_112, %c3_113] : memref<4x4xf32, #tpu.memory_space<smem>>
    %157 = vector.broadcast %156 : f32 to vector<2x128xf32>
    %158 = arith.mulf %157, %18 : vector<2x128xf32>
    %159 = arith.addf %155, %158 : vector<2x128xf32>
    %160 = arith.addf %44, %114 : vector<2x128xf32>
    %cst = arith.constant 0.000000e+00 : f32
    %161 = vector.broadcast %cst : f32 to vector<2x128xf32>
    %162 = arith.maximumf %160, %161 : vector<2x128xf32>
    %163 = arith.addf %62, %129 : vector<2x128xf32>
    %cst_114 = arith.constant 0.000000e+00 : f32
    %164 = vector.broadcast %cst_114 : f32 to vector<2x128xf32>
    %165 = arith.maximumf %163, %164 : vector<2x128xf32>
    %166 = arith.addf %80, %144 : vector<2x128xf32>
    %cst_115 = arith.constant 0.000000e+00 : f32
    %167 = vector.broadcast %cst_115 : f32 to vector<2x128xf32>
    %168 = arith.maximumf %166, %167 : vector<2x128xf32>
    %169 = arith.addf %98, %159 : vector<2x128xf32>
    %cst_116 = arith.constant 0.000000e+00 : f32
    %170 = vector.broadcast %cst_116 : f32 to vector<2x128xf32>
    %171 = arith.maximumf %169, %170 : vector<2x128xf32>
    %c0_117 = arith.constant 0 : index
    %c0_118 = arith.constant 0 : index
    %172 = memref.load %arg8[%c0_117, %c0_118] : memref<4x4xf32, #tpu.memory_space<smem>>
    %173 = vector.broadcast %172 : f32 to vector<2x128xf32>
    %174 = arith.mulf %173, %162 : vector<2x128xf32>
    %c0_119 = arith.constant 0 : index
    %c1_120 = arith.constant 1 : index
    %175 = memref.load %arg8[%c0_119, %c1_120] : memref<4x4xf32, #tpu.memory_space<smem>>
    %176 = vector.broadcast %175 : f32 to vector<2x128xf32>
    %177 = arith.mulf %176, %165 : vector<2x128xf32>
    %178 = arith.addf %174, %177 : vector<2x128xf32>
    %c0_121 = arith.constant 0 : index
    %c2_122 = arith.constant 2 : index
    %179 = memref.load %arg8[%c0_121, %c2_122] : memref<4x4xf32, #tpu.memory_space<smem>>
    %180 = vector.broadcast %179 : f32 to vector<2x128xf32>
    %181 = arith.mulf %180, %168 : vector<2x128xf32>
    %182 = arith.addf %178, %181 : vector<2x128xf32>
    %c0_123 = arith.constant 0 : index
    %c3_124 = arith.constant 3 : index
    %183 = memref.load %arg8[%c0_123, %c3_124] : memref<4x4xf32, #tpu.memory_space<smem>>
    %184 = vector.broadcast %183 : f32 to vector<2x128xf32>
    %185 = arith.mulf %184, %171 : vector<2x128xf32>
    %186 = arith.addf %182, %185 : vector<2x128xf32>
    %c0_125 = arith.constant 0 : index
    %187 = memref.load %arg9[%c0_125] : memref<4xf32, #tpu.memory_space<smem>>
    %188 = vector.broadcast %187 : f32 to vector<2x128xf32>
    %189 = arith.addf %186, %188 : vector<2x128xf32>
    %c1_126 = arith.constant 1 : index
    %c0_127 = arith.constant 0 : index
    %190 = memref.load %arg8[%c1_126, %c0_127] : memref<4x4xf32, #tpu.memory_space<smem>>
    %191 = vector.broadcast %190 : f32 to vector<2x128xf32>
    %192 = arith.mulf %191, %162 : vector<2x128xf32>
    %c1_128 = arith.constant 1 : index
    %c1_129 = arith.constant 1 : index
    %193 = memref.load %arg8[%c1_128, %c1_129] : memref<4x4xf32, #tpu.memory_space<smem>>
    %194 = vector.broadcast %193 : f32 to vector<2x128xf32>
    %195 = arith.mulf %194, %165 : vector<2x128xf32>
    %196 = arith.addf %192, %195 : vector<2x128xf32>
    %c1_130 = arith.constant 1 : index
    %c2_131 = arith.constant 2 : index
    %197 = memref.load %arg8[%c1_130, %c2_131] : memref<4x4xf32, #tpu.memory_space<smem>>
    %198 = vector.broadcast %197 : f32 to vector<2x128xf32>
    %199 = arith.mulf %198, %168 : vector<2x128xf32>
    %200 = arith.addf %196, %199 : vector<2x128xf32>
    %c1_132 = arith.constant 1 : index
    %c3_133 = arith.constant 3 : index
    %201 = memref.load %arg8[%c1_132, %c3_133] : memref<4x4xf32, #tpu.memory_space<smem>>
    %202 = vector.broadcast %201 : f32 to vector<2x128xf32>
    %203 = arith.mulf %202, %171 : vector<2x128xf32>
    %204 = arith.addf %200, %203 : vector<2x128xf32>
    %c1_134 = arith.constant 1 : index
    %205 = memref.load %arg9[%c1_134] : memref<4xf32, #tpu.memory_space<smem>>
    %206 = vector.broadcast %205 : f32 to vector<2x128xf32>
    %207 = arith.addf %204, %206 : vector<2x128xf32>
    %c2_135 = arith.constant 2 : index
    %c0_136 = arith.constant 0 : index
    %208 = memref.load %arg8[%c2_135, %c0_136] : memref<4x4xf32, #tpu.memory_space<smem>>
    %209 = vector.broadcast %208 : f32 to vector<2x128xf32>
    %210 = arith.mulf %209, %162 : vector<2x128xf32>
    %c2_137 = arith.constant 2 : index
    %c1_138 = arith.constant 1 : index
    %211 = memref.load %arg8[%c2_137, %c1_138] : memref<4x4xf32, #tpu.memory_space<smem>>
    %212 = vector.broadcast %211 : f32 to vector<2x128xf32>
    %213 = arith.mulf %212, %165 : vector<2x128xf32>
    %214 = arith.addf %210, %213 : vector<2x128xf32>
    %c2_139 = arith.constant 2 : index
    %c2_140 = arith.constant 2 : index
    %215 = memref.load %arg8[%c2_139, %c2_140] : memref<4x4xf32, #tpu.memory_space<smem>>
    %216 = vector.broadcast %215 : f32 to vector<2x128xf32>
    %217 = arith.mulf %216, %168 : vector<2x128xf32>
    %218 = arith.addf %214, %217 : vector<2x128xf32>
    %c2_141 = arith.constant 2 : index
    %c3_142 = arith.constant 3 : index
    %219 = memref.load %arg8[%c2_141, %c3_142] : memref<4x4xf32, #tpu.memory_space<smem>>
    %220 = vector.broadcast %219 : f32 to vector<2x128xf32>
    %221 = arith.mulf %220, %171 : vector<2x128xf32>
    %222 = arith.addf %218, %221 : vector<2x128xf32>
    %c2_143 = arith.constant 2 : index
    %223 = memref.load %arg9[%c2_143] : memref<4xf32, #tpu.memory_space<smem>>
    %224 = vector.broadcast %223 : f32 to vector<2x128xf32>
    %225 = arith.addf %222, %224 : vector<2x128xf32>
    %c3_144 = arith.constant 3 : index
    %c0_145 = arith.constant 0 : index
    %226 = memref.load %arg8[%c3_144, %c0_145] : memref<4x4xf32, #tpu.memory_space<smem>>
    %227 = vector.broadcast %226 : f32 to vector<2x128xf32>
    %228 = arith.mulf %227, %162 : vector<2x128xf32>
    %c3_146 = arith.constant 3 : index
    %c1_147 = arith.constant 1 : index
    %229 = memref.load %arg8[%c3_146, %c1_147] : memref<4x4xf32, #tpu.memory_space<smem>>
    %230 = vector.broadcast %229 : f32 to vector<2x128xf32>
    %231 = arith.mulf %230, %165 : vector<2x128xf32>
    %232 = arith.addf %228, %231 : vector<2x128xf32>
    %c3_148 = arith.constant 3 : index
    %c2_149 = arith.constant 2 : index
    %233 = memref.load %arg8[%c3_148, %c2_149] : memref<4x4xf32, #tpu.memory_space<smem>>
    %234 = vector.broadcast %233 : f32 to vector<2x128xf32>
    %235 = arith.mulf %234, %168 : vector<2x128xf32>
    %236 = arith.addf %232, %235 : vector<2x128xf32>
    %c3_150 = arith.constant 3 : index
    %c3_151 = arith.constant 3 : index
    %237 = memref.load %arg8[%c3_150, %c3_151] : memref<4x4xf32, #tpu.memory_space<smem>>
    %238 = vector.broadcast %237 : f32 to vector<2x128xf32>
    %239 = arith.mulf %238, %171 : vector<2x128xf32>
    %240 = arith.addf %236, %239 : vector<2x128xf32>
    %c3_152 = arith.constant 3 : index
    %241 = memref.load %arg9[%c3_152] : memref<4xf32, #tpu.memory_space<smem>>
    %242 = vector.broadcast %241 : f32 to vector<2x128xf32>
    %243 = arith.addf %240, %242 : vector<2x128xf32>
    %cst_153 = arith.constant 0.000000e+00 : f32
    %244 = vector.broadcast %cst_153 : f32 to vector<2x128xf32>
    %245 = arith.maximumf %189, %244 : vector<2x128xf32>
    %cst_154 = arith.constant 0.000000e+00 : f32
    %246 = vector.broadcast %cst_154 : f32 to vector<2x128xf32>
    %247 = arith.maximumf %207, %246 : vector<2x128xf32>
    %cst_155 = arith.constant 0.000000e+00 : f32
    %248 = vector.broadcast %cst_155 : f32 to vector<2x128xf32>
    %249 = arith.maximumf %225, %248 : vector<2x128xf32>
    %cst_156 = arith.constant 0.000000e+00 : f32
    %250 = vector.broadcast %cst_156 : f32 to vector<2x128xf32>
    %251 = arith.maximumf %243, %250 : vector<2x128xf32>
    %c0_157 = arith.constant 0 : index
    %252 = memref.load %arg10[%c0_157] : memref<4xf32, #tpu.memory_space<smem>>
    %253 = vector.broadcast %252 : f32 to vector<2x128xf32>
    %254 = arith.mulf %253, %245 : vector<2x128xf32>
    %c1_158 = arith.constant 1 : index
    %255 = memref.load %arg10[%c1_158] : memref<4xf32, #tpu.memory_space<smem>>
    %256 = vector.broadcast %255 : f32 to vector<2x128xf32>
    %257 = arith.mulf %256, %247 : vector<2x128xf32>
    %258 = arith.addf %254, %257 : vector<2x128xf32>
    %c2_159 = arith.constant 2 : index
    %259 = memref.load %arg10[%c2_159] : memref<4xf32, #tpu.memory_space<smem>>
    %260 = vector.broadcast %259 : f32 to vector<2x128xf32>
    %261 = arith.mulf %260, %249 : vector<2x128xf32>
    %262 = arith.addf %258, %261 : vector<2x128xf32>
    %c3_160 = arith.constant 3 : index
    %263 = memref.load %arg10[%c3_160] : memref<4xf32, #tpu.memory_space<smem>>
    %264 = vector.broadcast %263 : f32 to vector<2x128xf32>
    %265 = arith.mulf %264, %251 : vector<2x128xf32>
    %266 = arith.addf %262, %265 : vector<2x128xf32>
    %267 = vector.broadcast %99 : f32 to vector<2x128xf32>
    %268 = arith.addf %266, %267 : vector<2x128xf32>
    %c0_161 = arith.constant 0 : index
    %c0_162 = arith.constant 0 : index
    %269 = memref.load %arg6[%c0_161, %c0_162] : memref<4x4xf32, #tpu.memory_space<smem>>
    %270 = vector.broadcast %269 : f32 to vector<2x128xf32>
    %271 = arith.mulf %270, %20 : vector<2x128xf32>
    %c0_163 = arith.constant 0 : index
    %c1_164 = arith.constant 1 : index
    %272 = memref.load %arg6[%c0_163, %c1_164] : memref<4x4xf32, #tpu.memory_space<smem>>
    %273 = vector.broadcast %272 : f32 to vector<2x128xf32>
    %274 = arith.mulf %273, %22 : vector<2x128xf32>
    %275 = arith.addf %271, %274 : vector<2x128xf32>
    %c0_165 = arith.constant 0 : index
    %c2_166 = arith.constant 2 : index
    %276 = memref.load %arg6[%c0_165, %c2_166] : memref<4x4xf32, #tpu.memory_space<smem>>
    %277 = vector.broadcast %276 : f32 to vector<2x128xf32>
    %278 = arith.mulf %277, %24 : vector<2x128xf32>
    %279 = arith.addf %275, %278 : vector<2x128xf32>
    %c0_167 = arith.constant 0 : index
    %c3_168 = arith.constant 3 : index
    %280 = memref.load %arg6[%c0_167, %c3_168] : memref<4x4xf32, #tpu.memory_space<smem>>
    %281 = vector.broadcast %280 : f32 to vector<2x128xf32>
    %282 = arith.mulf %281, %26 : vector<2x128xf32>
    %283 = arith.addf %279, %282 : vector<2x128xf32>
    %c1_169 = arith.constant 1 : index
    %c0_170 = arith.constant 0 : index
    %284 = memref.load %arg6[%c1_169, %c0_170] : memref<4x4xf32, #tpu.memory_space<smem>>
    %285 = vector.broadcast %284 : f32 to vector<2x128xf32>
    %286 = arith.mulf %285, %20 : vector<2x128xf32>
    %c1_171 = arith.constant 1 : index
    %c1_172 = arith.constant 1 : index
    %287 = memref.load %arg6[%c1_171, %c1_172] : memref<4x4xf32, #tpu.memory_space<smem>>
    %288 = vector.broadcast %287 : f32 to vector<2x128xf32>
    %289 = arith.mulf %288, %22 : vector<2x128xf32>
    %290 = arith.addf %286, %289 : vector<2x128xf32>
    %c1_173 = arith.constant 1 : index
    %c2_174 = arith.constant 2 : index
    %291 = memref.load %arg6[%c1_173, %c2_174] : memref<4x4xf32, #tpu.memory_space<smem>>
    %292 = vector.broadcast %291 : f32 to vector<2x128xf32>
    %293 = arith.mulf %292, %24 : vector<2x128xf32>
    %294 = arith.addf %290, %293 : vector<2x128xf32>
    %c1_175 = arith.constant 1 : index
    %c3_176 = arith.constant 3 : index
    %295 = memref.load %arg6[%c1_175, %c3_176] : memref<4x4xf32, #tpu.memory_space<smem>>
    %296 = vector.broadcast %295 : f32 to vector<2x128xf32>
    %297 = arith.mulf %296, %26 : vector<2x128xf32>
    %298 = arith.addf %294, %297 : vector<2x128xf32>
    %c2_177 = arith.constant 2 : index
    %c0_178 = arith.constant 0 : index
    %299 = memref.load %arg6[%c2_177, %c0_178] : memref<4x4xf32, #tpu.memory_space<smem>>
    %300 = vector.broadcast %299 : f32 to vector<2x128xf32>
    %301 = arith.mulf %300, %20 : vector<2x128xf32>
    %c2_179 = arith.constant 2 : index
    %c1_180 = arith.constant 1 : index
    %302 = memref.load %arg6[%c2_179, %c1_180] : memref<4x4xf32, #tpu.memory_space<smem>>
    %303 = vector.broadcast %302 : f32 to vector<2x128xf32>
    %304 = arith.mulf %303, %22 : vector<2x128xf32>
    %305 = arith.addf %301, %304 : vector<2x128xf32>
    %c2_181 = arith.constant 2 : index
    %c2_182 = arith.constant 2 : index
    %306 = memref.load %arg6[%c2_181, %c2_182] : memref<4x4xf32, #tpu.memory_space<smem>>
    %307 = vector.broadcast %306 : f32 to vector<2x128xf32>
    %308 = arith.mulf %307, %24 : vector<2x128xf32>
    %309 = arith.addf %305, %308 : vector<2x128xf32>
    %c2_183 = arith.constant 2 : index
    %c3_184 = arith.constant 3 : index
    %310 = memref.load %arg6[%c2_183, %c3_184] : memref<4x4xf32, #tpu.memory_space<smem>>
    %311 = vector.broadcast %310 : f32 to vector<2x128xf32>
    %312 = arith.mulf %311, %26 : vector<2x128xf32>
    %313 = arith.addf %309, %312 : vector<2x128xf32>
    %c3_185 = arith.constant 3 : index
    %c0_186 = arith.constant 0 : index
    %314 = memref.load %arg6[%c3_185, %c0_186] : memref<4x4xf32, #tpu.memory_space<smem>>
    %315 = vector.broadcast %314 : f32 to vector<2x128xf32>
    %316 = arith.mulf %315, %20 : vector<2x128xf32>
    %c3_187 = arith.constant 3 : index
    %c1_188 = arith.constant 1 : index
    %317 = memref.load %arg6[%c3_187, %c1_188] : memref<4x4xf32, #tpu.memory_space<smem>>
    %318 = vector.broadcast %317 : f32 to vector<2x128xf32>
    %319 = arith.mulf %318, %22 : vector<2x128xf32>
    %320 = arith.addf %316, %319 : vector<2x128xf32>
    %c3_189 = arith.constant 3 : index
    %c2_190 = arith.constant 2 : index
    %321 = memref.load %arg6[%c3_189, %c2_190] : memref<4x4xf32, #tpu.memory_space<smem>>
    %322 = vector.broadcast %321 : f32 to vector<2x128xf32>
    %323 = arith.mulf %322, %24 : vector<2x128xf32>
    %324 = arith.addf %320, %323 : vector<2x128xf32>
    %c3_191 = arith.constant 3 : index
    %c3_192 = arith.constant 3 : index
    %325 = memref.load %arg6[%c3_191, %c3_192] : memref<4x4xf32, #tpu.memory_space<smem>>
    %326 = vector.broadcast %325 : f32 to vector<2x128xf32>
    %327 = arith.mulf %326, %26 : vector<2x128xf32>
    %328 = arith.addf %324, %327 : vector<2x128xf32>
    %329 = arith.addf %44, %283 : vector<2x128xf32>
    %cst_193 = arith.constant 0.000000e+00 : f32
    %330 = vector.broadcast %cst_193 : f32 to vector<2x128xf32>
    %331 = arith.maximumf %329, %330 : vector<2x128xf32>
    %332 = arith.addf %62, %298 : vector<2x128xf32>
    %cst_194 = arith.constant 0.000000e+00 : f32
    %333 = vector.broadcast %cst_194 : f32 to vector<2x128xf32>
    %334 = arith.maximumf %332, %333 : vector<2x128xf32>
    %335 = arith.addf %80, %313 : vector<2x128xf32>
    %cst_195 = arith.constant 0.000000e+00 : f32
    %336 = vector.broadcast %cst_195 : f32 to vector<2x128xf32>
    %337 = arith.maximumf %335, %336 : vector<2x128xf32>
    %338 = arith.addf %98, %328 : vector<2x128xf32>
    %cst_196 = arith.constant 0.000000e+00 : f32
    %339 = vector.broadcast %cst_196 : f32 to vector<2x128xf32>
    %340 = arith.maximumf %338, %339 : vector<2x128xf32>
    %c0_197 = arith.constant 0 : index
    %c0_198 = arith.constant 0 : index
    %341 = memref.load %arg8[%c0_197, %c0_198] : memref<4x4xf32, #tpu.memory_space<smem>>
    %342 = vector.broadcast %341 : f32 to vector<2x128xf32>
    %343 = arith.mulf %342, %331 : vector<2x128xf32>
    %c0_199 = arith.constant 0 : index
    %c1_200 = arith.constant 1 : index
    %344 = memref.load %arg8[%c0_199, %c1_200] : memref<4x4xf32, #tpu.memory_space<smem>>
    %345 = vector.broadcast %344 : f32 to vector<2x128xf32>
    %346 = arith.mulf %345, %334 : vector<2x128xf32>
    %347 = arith.addf %343, %346 : vector<2x128xf32>
    %c0_201 = arith.constant 0 : index
    %c2_202 = arith.constant 2 : index
    %348 = memref.load %arg8[%c0_201, %c2_202] : memref<4x4xf32, #tpu.memory_space<smem>>
    %349 = vector.broadcast %348 : f32 to vector<2x128xf32>
    %350 = arith.mulf %349, %337 : vector<2x128xf32>
    %351 = arith.addf %347, %350 : vector<2x128xf32>
    %c0_203 = arith.constant 0 : index
    %c3_204 = arith.constant 3 : index
    %352 = memref.load %arg8[%c0_203, %c3_204] : memref<4x4xf32, #tpu.memory_space<smem>>
    %353 = vector.broadcast %352 : f32 to vector<2x128xf32>
    %354 = arith.mulf %353, %340 : vector<2x128xf32>
    %355 = arith.addf %351, %354 : vector<2x128xf32>
    %c0_205 = arith.constant 0 : index
    %356 = memref.load %arg9[%c0_205] : memref<4xf32, #tpu.memory_space<smem>>
    %357 = vector.broadcast %356 : f32 to vector<2x128xf32>
    %358 = arith.addf %355, %357 : vector<2x128xf32>
    %c1_206 = arith.constant 1 : index
    %c0_207 = arith.constant 0 : index
    %359 = memref.load %arg8[%c1_206, %c0_207] : memref<4x4xf32, #tpu.memory_space<smem>>
    %360 = vector.broadcast %359 : f32 to vector<2x128xf32>
    %361 = arith.mulf %360, %331 : vector<2x128xf32>
    %c1_208 = arith.constant 1 : index
    %c1_209 = arith.constant 1 : index
    %362 = memref.load %arg8[%c1_208, %c1_209] : memref<4x4xf32, #tpu.memory_space<smem>>
    %363 = vector.broadcast %362 : f32 to vector<2x128xf32>
    %364 = arith.mulf %363, %334 : vector<2x128xf32>
    %365 = arith.addf %361, %364 : vector<2x128xf32>
    %c1_210 = arith.constant 1 : index
    %c2_211 = arith.constant 2 : index
    %366 = memref.load %arg8[%c1_210, %c2_211] : memref<4x4xf32, #tpu.memory_space<smem>>
    %367 = vector.broadcast %366 : f32 to vector<2x128xf32>
    %368 = arith.mulf %367, %337 : vector<2x128xf32>
    %369 = arith.addf %365, %368 : vector<2x128xf32>
    %c1_212 = arith.constant 1 : index
    %c3_213 = arith.constant 3 : index
    %370 = memref.load %arg8[%c1_212, %c3_213] : memref<4x4xf32, #tpu.memory_space<smem>>
    %371 = vector.broadcast %370 : f32 to vector<2x128xf32>
    %372 = arith.mulf %371, %340 : vector<2x128xf32>
    %373 = arith.addf %369, %372 : vector<2x128xf32>
    %c1_214 = arith.constant 1 : index
    %374 = memref.load %arg9[%c1_214] : memref<4xf32, #tpu.memory_space<smem>>
    %375 = vector.broadcast %374 : f32 to vector<2x128xf32>
    %376 = arith.addf %373, %375 : vector<2x128xf32>
    %c2_215 = arith.constant 2 : index
    %c0_216 = arith.constant 0 : index
    %377 = memref.load %arg8[%c2_215, %c0_216] : memref<4x4xf32, #tpu.memory_space<smem>>
    %378 = vector.broadcast %377 : f32 to vector<2x128xf32>
    %379 = arith.mulf %378, %331 : vector<2x128xf32>
    %c2_217 = arith.constant 2 : index
    %c1_218 = arith.constant 1 : index
    %380 = memref.load %arg8[%c2_217, %c1_218] : memref<4x4xf32, #tpu.memory_space<smem>>
    %381 = vector.broadcast %380 : f32 to vector<2x128xf32>
    %382 = arith.mulf %381, %334 : vector<2x128xf32>
    %383 = arith.addf %379, %382 : vector<2x128xf32>
    %c2_219 = arith.constant 2 : index
    %c2_220 = arith.constant 2 : index
    %384 = memref.load %arg8[%c2_219, %c2_220] : memref<4x4xf32, #tpu.memory_space<smem>>
    %385 = vector.broadcast %384 : f32 to vector<2x128xf32>
    %386 = arith.mulf %385, %337 : vector<2x128xf32>
    %387 = arith.addf %383, %386 : vector<2x128xf32>
    %c2_221 = arith.constant 2 : index
    %c3_222 = arith.constant 3 : index
    %388 = memref.load %arg8[%c2_221, %c3_222] : memref<4x4xf32, #tpu.memory_space<smem>>
    %389 = vector.broadcast %388 : f32 to vector<2x128xf32>
    %390 = arith.mulf %389, %340 : vector<2x128xf32>
    %391 = arith.addf %387, %390 : vector<2x128xf32>
    %c2_223 = arith.constant 2 : index
    %392 = memref.load %arg9[%c2_223] : memref<4xf32, #tpu.memory_space<smem>>
    %393 = vector.broadcast %392 : f32 to vector<2x128xf32>
    %394 = arith.addf %391, %393 : vector<2x128xf32>
    %c3_224 = arith.constant 3 : index
    %c0_225 = arith.constant 0 : index
    %395 = memref.load %arg8[%c3_224, %c0_225] : memref<4x4xf32, #tpu.memory_space<smem>>
    %396 = vector.broadcast %395 : f32 to vector<2x128xf32>
    %397 = arith.mulf %396, %331 : vector<2x128xf32>
    %c3_226 = arith.constant 3 : index
    %c1_227 = arith.constant 1 : index
    %398 = memref.load %arg8[%c3_226, %c1_227] : memref<4x4xf32, #tpu.memory_space<smem>>
    %399 = vector.broadcast %398 : f32 to vector<2x128xf32>
    %400 = arith.mulf %399, %334 : vector<2x128xf32>
    %401 = arith.addf %397, %400 : vector<2x128xf32>
    %c3_228 = arith.constant 3 : index
    %c2_229 = arith.constant 2 : index
    %402 = memref.load %arg8[%c3_228, %c2_229] : memref<4x4xf32, #tpu.memory_space<smem>>
    %403 = vector.broadcast %402 : f32 to vector<2x128xf32>
    %404 = arith.mulf %403, %337 : vector<2x128xf32>
    %405 = arith.addf %401, %404 : vector<2x128xf32>
    %c3_230 = arith.constant 3 : index
    %c3_231 = arith.constant 3 : index
    %406 = memref.load %arg8[%c3_230, %c3_231] : memref<4x4xf32, #tpu.memory_space<smem>>
    %407 = vector.broadcast %406 : f32 to vector<2x128xf32>
    %408 = arith.mulf %407, %340 : vector<2x128xf32>
    %409 = arith.addf %405, %408 : vector<2x128xf32>
    %c3_232 = arith.constant 3 : index
    %410 = memref.load %arg9[%c3_232] : memref<4xf32, #tpu.memory_space<smem>>
    %411 = vector.broadcast %410 : f32 to vector<2x128xf32>
    %412 = arith.addf %409, %411 : vector<2x128xf32>
    %cst_233 = arith.constant 0.000000e+00 : f32
    %413 = vector.broadcast %cst_233 : f32 to vector<2x128xf32>
    %414 = arith.maximumf %358, %413 : vector<2x128xf32>
    %cst_234 = arith.constant 0.000000e+00 : f32
    %415 = vector.broadcast %cst_234 : f32 to vector<2x128xf32>
    %416 = arith.maximumf %376, %415 : vector<2x128xf32>
    %cst_235 = arith.constant 0.000000e+00 : f32
    %417 = vector.broadcast %cst_235 : f32 to vector<2x128xf32>
    %418 = arith.maximumf %394, %417 : vector<2x128xf32>
    %cst_236 = arith.constant 0.000000e+00 : f32
    %419 = vector.broadcast %cst_236 : f32 to vector<2x128xf32>
    %420 = arith.maximumf %412, %419 : vector<2x128xf32>
    %c0_237 = arith.constant 0 : index
    %421 = memref.load %arg10[%c0_237] : memref<4xf32, #tpu.memory_space<smem>>
    %422 = vector.broadcast %421 : f32 to vector<2x128xf32>
    %423 = arith.mulf %422, %414 : vector<2x128xf32>
    %c1_238 = arith.constant 1 : index
    %424 = memref.load %arg10[%c1_238] : memref<4xf32, #tpu.memory_space<smem>>
    %425 = vector.broadcast %424 : f32 to vector<2x128xf32>
    %426 = arith.mulf %425, %416 : vector<2x128xf32>
    %427 = arith.addf %423, %426 : vector<2x128xf32>
    %c2_239 = arith.constant 2 : index
    %428 = memref.load %arg10[%c2_239] : memref<4xf32, #tpu.memory_space<smem>>
    %429 = vector.broadcast %428 : f32 to vector<2x128xf32>
    %430 = arith.mulf %429, %418 : vector<2x128xf32>
    %431 = arith.addf %427, %430 : vector<2x128xf32>
    %c3_240 = arith.constant 3 : index
    %432 = memref.load %arg10[%c3_240] : memref<4xf32, #tpu.memory_space<smem>>
    %433 = vector.broadcast %432 : f32 to vector<2x128xf32>
    %434 = arith.mulf %433, %420 : vector<2x128xf32>
    %435 = arith.addf %431, %434 : vector<2x128xf32>
    %436 = vector.broadcast %99 : f32 to vector<2x128xf32>
    %437 = arith.addf %435, %436 : vector<2x128xf32>
    %cst_241 = arith.constant 0.000000e+00 : f32
    %438 = vector.broadcast %cst_241 : f32 to vector<2x128xf32>
    %439 = arith.subf %438, %437 : vector<2x128xf32>
    %440 = math.absf %439 : vector<2x128xf32>
    %cst_242 = arith.constant 0.000000e+00 : f32
    %441 = vector.broadcast %cst_242 : f32 to vector<2x128xf32>
    %442 = arith.subf %441, %440 : vector<2x128xf32>
    %443 = math.exp %442 : vector<2x128xf32>
    %444 = math.log1p %443 : vector<2x128xf32>
    %cst_243 = arith.constant 0.000000e+00 : f32
    %445 = vector.broadcast %cst_243 : f32 to vector<2x128xf32>
    %446 = arith.maximumf %439, %445 : vector<2x128xf32>
    %447 = arith.addf %444, %446 : vector<2x128xf32>
    %448 = math.absf %268 : vector<2x128xf32>
    %cst_244 = arith.constant 0.000000e+00 : f32
    %449 = vector.broadcast %cst_244 : f32 to vector<2x128xf32>
    %450 = arith.subf %449, %448 : vector<2x128xf32>
    %451 = math.exp %450 : vector<2x128xf32>
    %452 = math.log1p %451 : vector<2x128xf32>
    %cst_245 = arith.constant 0.000000e+00 : f32
    %453 = vector.broadcast %cst_245 : f32 to vector<2x128xf32>
    %454 = arith.maximumf %268, %453 : vector<2x128xf32>
    %455 = arith.addf %452, %454 : vector<2x128xf32>
    %cst_246 = arith.constant 1.000000e-01 : f32
    %456 = vector.broadcast %cst_246 : f32 to vector<2x128xf32>
    %457 = arith.mulf %456, %455 : vector<2x128xf32>
    %458 = arith.addf %447, %457 : vector<2x128xf32>
    %c0_247 = arith.constant 0 : index
    %c0_248 = arith.constant 0 : index
    %c0_249 = arith.constant 0 : index
    %459 = vector.load %arg12[%c0_247, %c0_248, %c0_249] : memref<1x2x128xf32, #tpu.memory_space<vmem>>, vector<1x2x128xf32>
    %460 = vector.shape_cast %459 : vector<1x2x128xf32> to vector<2x128xf32>
    %461 = arith.addf %460, %458 : vector<2x128xf32>
    %c0_250 = arith.constant 0 : index
    %c0_251 = arith.constant 0 : index
    %c0_252 = arith.constant 0 : index
    %462 = vector.load %arg12[%c0_250, %c0_251, %c0_252] : memref<1x2x128xf32, #tpu.memory_space<vmem>>, vector<1x2x128xf32>
    %463 = vector.shape_cast %462 : vector<1x2x128xf32> to vector<2x128xf32>
    %464 = vector.shape_cast %461 : vector<2x128xf32> to vector<1x2x128xf32>
    tpu.vector_store %arg12[%c0_250, %c0_251, %c0_252], %464 {strides = array<i32>} : memref<1x2x128xf32, #tpu.memory_space<vmem>>, vector<1x2x128xf32>,
    return
  }
  func.func @transform_0(%arg0: i32, %arg1: i32) -> (i32, i32, i32, i32) {
    %c0_i32 = arith.constant 0 : i32
    %c0_i32_0 = arith.constant 0 : i32
    %c0_i32_1 = arith.constant 0 : i32
    return %arg0, %c0_i32, %arg1, %c0_i32_0 : i32, i32, i32, i32
  }
  func.func @transform_1(%arg0: i32, %arg1: i32) -> (i32, i32, i32, i32) {
    %c0_i32 = arith.constant 0 : i32
    %c0_i32_0 = arith.constant 0 : i32
    %c0_i32_1 = arith.constant 0 : i32
    return %arg0, %c0_i32, %arg1, %c0_i32_0 : i32, i32, i32, i32
  }
  func.func @transform_2(%arg0: i32, %arg1: i32) -> (i32, i32, i32, i32) {
    %c0_i32 = arith.constant 0 : i32
    %c0_i32_0 = arith.constant 0 : i32
    %c0_i32_1 = arith.constant 0 : i32
    return %arg0, %c0_i32, %arg1, %c0_i32_0 : i32, i32, i32, i32
  }
  func.func @transform_3(%arg0: i32, %arg1: i32) -> (i32, i32) {
    %c0_i32 = arith.constant 0 : i32
    %c0_i32_0 = arith.constant 0 : i32
    %c0_i32_1 = arith.constant 0 : i32
    return %c0_i32, %c0_i32_0 : i32, i32
  }
  func.func @transform_4(%arg0: i32, %arg1: i32) -> (i32, i32) {
    %c0_i32 = arith.constant 0 : i32
    %c0_i32_0 = arith.constant 0 : i32
    %c0_i32_1 = arith.constant 0 : i32
    return %c0_i32, %c0_i32_0 : i32, i32
  }
  func.func @transform_5(%arg0: i32, %arg1: i32) -> i32 {
    %c0_i32 = arith.constant 0 : i32
    %c0_i32_0 = arith.constant 0 : i32
    return %c0_i32 : i32
  }
  func.func @transform_6(%arg0: i32, %arg1: i32) -> (i32, i32) {
    %c0_i32 = arith.constant 0 : i32
    %c0_i32_0 = arith.constant 0 : i32
    %c0_i32_1 = arith.constant 0 : i32
    return %c0_i32, %c0_i32_0 : i32, i32
  }
  func.func @transform_7(%arg0: i32, %arg1: i32) -> i32 {
    %c0_i32 = arith.constant 0 : i32
    %c0_i32_0 = arith.constant 0 : i32
    return %c0_i32 : i32
  }
  func.func @transform_8(%arg0: i32, %arg1: i32) -> i32 {
    %c0_i32 = arith.constant 0 : i32
    %c0_i32_0 = arith.constant 0 : i32
    return %c0_i32 : i32
  }
  func.func @transform_9(%arg0: i32, %arg1: i32) -> i32 {
    %c0_i32 = arith.constant 0 : i32
    %c0_i32_0 = arith.constant 0 : i32
    return %c0_i32 : i32
  }
  func.func @transform_10(%arg0: i32, %arg1: i32) -> (i32, i32, i32) {
    %c0_i32 = arith.constant 0 : i32
    %c0_i32_0 = arith.constant 0 : i32
    %c0_i32_1 = arith.constant 0 : i32
    return %arg0, %c0_i32, %c0_i32_0 : i32, i32, i32
  }
}

</mosaic_0001>

<llo_original>
// kernel: tpu_custom_call.1
$region0: #{tpu_custom_call.1}
  #allocation0 [shape = 'u32[]', space=smem, size = 0x4, offset = 0x4, fixed_abs, tag = 'smem constant byte address 0x4 - core index']
  #allocation1 [shape = 'u32[144,128]{1,0:T(1,128)}', space=vmem, size = 0x12000, scoped, tag = 'internal scratch']
  #allocation2 [shape = 'f32[1]{0:T(128)S(6)}', space=smem, size = 0x200, scoped, tag = 'scoped memory for tpu_custom_call.1']
  %s0 = inlined_call_operand.hbm [shape: f32[2,4,2,128], index: 0, kind: input, shape index: {}]
  %s1 = inlined_call_operand.hbm [shape: f32[2,4,2,128], index: 1, kind: input, shape index: {}]
  %s2 = inlined_call_operand.hbm [shape: f32[2,4,2,128], index: 2, kind: input, shape index: {}]
  %s3 = inlined_call_operand.vmem [shape: f32[4,4], index: 3, kind: input, shape index: {}]
  %s4 = inlined_call_operand.vmem [shape: f32[4,4], index: 4, kind: input, shape index: {}]
  %s5 = inlined_call_operand.vmem [shape: f32[4], index: 5, kind: input, shape index: {}]
  %s6 = inlined_call_operand.vmem [shape: f32[4,4], index: 6, kind: input, shape index: {}]
  %s7 = inlined_call_operand.vmem [shape: f32[4], index: 7, kind: input, shape index: {}]
  %s8 = inlined_call_operand.vmem [shape: f32[4], index: 8, kind: input, shape index: {}]
  %s9 = inlined_call_operand.<no memory space> [shape: f32[1], index: 9, kind: input, shape index: {}]
  %s10 = inlined_call_operand.hbm [shape: f32[2,2,128], index: 10, kind: output, shape index: {}]
  %s11 = sld [smem:[#allocation0]]
  $region113: #{tpu_custom_call.1} parent=0
    _
  %s13 = ssub.s32 1, %s11
  %s14 = scalar_select 0, %s13, %s11
  %15 = sst [smem:[#allocation2]] %s9
  $region1: #{tpu_custom_call.1} parent=0
    #allocation3 [shape = 'u8[8192]{0}', space=vmem, size = 0x2000, scoped, tag = 'input window, operand 0']
    #allocation4 [shape = 's32[2]{0}', space=sflag, size = 0x8, scoped, tag = 'scoped memory for tpu_custom_call.1']
    #allocation5 [shape = 's32[2]{0}', space=sflag, size = 0x8, scoped, tag = 'scoped memory for tpu_custom_call.1']
    #allocation6 [shape = 's32[2]{0}', space=sflag, size = 0x8, scoped, tag = 'scoped memory for tpu_custom_call.1']
    #allocation7 [shape = 'u8[8192]{0}', space=vmem, size = 0x2000, scoped, tag = 'input window, operand 1']
    #allocation8 [shape = 's32[2]{0}', space=sflag, size = 0x8, scoped, tag = 'scoped memory for tpu_custom_call.1']
    #allocation9 [shape = 'u8[8192]{0}', space=vmem, size = 0x2000, scoped, tag = 'input window, operand 2']
    #allocation10 [shape = 'u8[2048]{0}', space=smem, size = 0x800, scoped, tag = 'input window, operand 3, single buffered']
    #allocation11 [shape = 'u8[2048]{0}', space=smem, size = 0x800, scoped, tag = 'input window, operand 4, single buffered']
    #allocation12 [shape = 's32[1]{0}', space=sflag, size = 0x4, scoped, tag = 'scoped memory for tpu_custom_call.1']
    #allocation13 [shape = 'u8[512]{0}', space=smem, size = 0x200, scoped, tag = 'input window, operand 5, single buffered']
    #allocation14 [shape = 'u8[2048]{0}', space=smem, size = 0x800, scoped, tag = 'input window, operand 6, single buffered']
    #allocation15 [shape = 's32[1]{0}', space=sflag, size = 0x4, scoped, tag = 'scoped memory for tpu_custom_call.1']
    #allocation16 [shape = 'u8[512]{0}', space=smem, size = 0x200, scoped, tag = 'input window, operand 7, single buffered']
    #allocation17 [shape = 'u8[512]{0}', space=smem, size = 0x200, scoped, tag = 'input window, operand 8, single buffered']
    #allocation18 [shape = 's32[1]{0}', space=sflag, size = 0x4, scoped, tag = 'scoped memory for tpu_custom_call.1']
    #allocation19 [shape = 'u8[2048]{0}', space=vmem, size = 0x800, scoped, tag = 'output window, operand 0']
    %16 = vsyncpa [#allocation4], 0
    %s17 = scalar_lea.sflag [#allocation4], 1
    %18 = vsyncpa %s17, 0
    %19 = vsyncpa [#allocation8], 0
    %s20 = scalar_lea.sflag [#allocation8], 1
    %21 = vsyncpa %s20, 0
    %22 = vsyncpa [#allocation6], 0
    %23 = vsyncpa [#allocation12], 0
    %24 = vsyncpa [#allocation15], 0
    %25 = vsyncpa [#allocation18], 0
    %26 = vsyncpa [#allocation5], 0
    %s27 = scalar_lea.sflag [#allocation5], 1
    %28 = vsyncpa %s27, 0
    loop: start=0, step=1, limit=4
    $region2: #{tpu_custom_call.1} parent=1 // loop_pre_header
      _
    $region3: #{tpu_custom_call.1} parent=1 // loop_header
      %s30 = sphi 0, %s34
      %p31 = scmp.ge.s32.totalorder %s30, 4
      %s37 = sphi 0, %s49
      %s38 = sphi 0, %s45
      %s39 = sphi 0, %s37
      %s40 = sphi 0, %s38
      %s41 = sphi 0, %s39
      %s42 = sphi 0, %s40
      %s54 = sphi 0, %s56
      %s57 = sphi 0, %s54
      %s58 = sphi 0, %s57
      %s74 = sphi 0, %s58
      %s82 = sphi 0, %s84
      %s85 = sphi 0, %s82
      %s86 = sphi 0, %s85
      %s102 = sphi 0, %s86
      %s110 = sphi 0, %s112
      %s113 = sphi 0, %s110
      %s114 = sphi 0, %s113
      %s130 = sphi 0, %s114
      %s134 = sphi 0, %s134
      %s136 = sphi 0, %s134
      %s137 = sphi 0, %s136
      %s151 = sphi 0, %s137
      %s155 = sphi 0, %s155
      %s157 = sphi 0, %s155
      %s158 = sphi 0, %s157
      %s172 = sphi 0, %s158
      %s176 = sphi 0, %s176
      %s178 = sphi 0, %s176
      %s179 = sphi 0, %s178
      %s193 = sphi 0, %s179
      %s197 = sphi 0, %s197
      %s199 = sphi 0, %s197
      %s200 = sphi 0, %s199
      %s214 = sphi 0, %s200
      %s218 = sphi 0, %s218
      %s220 = sphi 0, %s218
      %s221 = sphi 0, %s220
      %s235 = sphi 0, %s221
      %s239 = sphi 0, %s239
      %s241 = sphi 0, %s239
      %s242 = sphi 0, %s241
      %s256 = sphi 0, %s242
      %s260 = sphi 0, %s260
      %s262 = sphi 0, %s260
      %s263 = sphi 0, %s262
      %s277 = sphi 0, %s263
      %s283 = sphi 0, %s285
      %s286 = sphi 0, %s283
      %s287 = sphi 0, %s286
      %s303 = sphi 0, %s287
    $region4: #{tpu_custom_call.1} parent=1 // loop_header_branch
      %33 = sbr.rel (%p31) target = $region8
    $region5: #{tpu_custom_call.1} parent=1 // loop_body
      %s35 = ssub.s32 %s30, 1
      %s36 = ssub.s32 %s30, 2
      %s43 = sadd.s32 1, %s38
      %p44 = scmp.ge.s32.totalorder %s43, 1
      %s45 = scalar_select %p44, 0, %s43
      %s46 = sadd.s32 1, %s37
      %s47 = scalar_select %p44, %s46, %s37
      %p48 = scmp.ge.s32.totalorder %s47, 2
      %s49 = scalar_select %p48, 0, %s47
      %s50 = ssub.s32 %s37, %s49
      %s51 = ssub.s32 %s38, %s45
      %s52 = sor.u32 %s50, %s51
      %p53 = scmp.eq.s32.totalorder %s52, 0
      %s55 = sadd.s32 %s54, 1
      %s56 = scalar_select %p53, %s54, %s55
      %p59 = pneg %p53
      %p60 = scmp.eq.s32.totalorder %s30, 1
      %p61 = por %p59, %p60
      %p62 = scmp.ne.s32.totalorder %s54, %s57
      %p63 = scmp.eq.s32.totalorder %s30, 0
      %p64 = por %p62, %p63
      %p65 = scmp.ne.s32.totalorder %s54, %s57
      %p66 = scmp.eq.s32.totalorder %s35, 1
      %p67 = por %p65, %p66
      %p68 = scmp.ne.s32.totalorder %s57, %s58
      %p69 = scmp.eq.s32.totalorder %s35, 0
      %p70 = por %p68, %p69
      %p71 = scmp.ne.s32.totalorder %s57, %s58
      %p72 = scmp.eq.s32.totalorder %s36, 1
      %p73 = por %p71, %p72
      %p75 = scmp.ne.s32.totalorder %s58, %s74
      %p76 = scmp.eq.s32.totalorder %s36, 0
      %p77 = por %p75, %p76
      %s78 = ssub.s32 %s37, %s49
      %s79 = ssub.s32 %s38, %s45
      %s80 = sor.u32 %s78, %s79
      %p81 = scmp.eq.s32.totalorder %s80, 0
      %s83 = sadd.s32 %s82, 1
      %s84 = scalar_select %p81, %s82, %s83
      %p87 = pneg %p81
      %p88 = scmp.eq.s32.totalorder %s30, 1
      %p89 = por %p87, %p88
      %p90 = scmp.ne.s32.totalorder %s82, %s85
      %p91 = scmp.eq.s32.totalorder %s30, 0
      %p92 = por %p90, %p91
      %p93 = scmp.ne.s32.totalorder %s82, %s85
      %p94 = scmp.eq.s32.totalorder %s35, 1
      %p95 = por %p93, %p94
      %p96 = scmp.ne.s32.totalorder %s85, %s86
      %p97 = scmp.eq.s32.totalorder %s35, 0
      %p98 = por %p96, %p97
      %p99 = scmp.ne.s32.totalorder %s85, %s86
      %p100 = scmp.eq.s32.totalorder %s36, 1
      %p101 = por %p99, %p100
      %p103 = scmp.ne.s32.totalorder %s86, %s102
      %p104 = scmp.eq.s32.totalorder %s36, 0
      %p105 = por %p103, %p104
      %s106 = ssub.s32 %s37, %s49
      %s107 = ssub.s32 %s38, %s45
      %s108 = sor.u32 %s106, %s107
      %p109 = scmp.eq.s32.totalorder %s108, 0
      %s111 = sadd.s32 %s110, 1
      %s112 = scalar_select %p109, %s110, %s111
      %p115 = pneg %p109
      %p116 = scmp.eq.s32.totalorder %s30, 1
      %p117 = por %p115, %p116
      %p118 = scmp.ne.s32.totalorder %s110, %s113
      %p119 = scmp.eq.s32.totalorder %s30, 0
      %p120 = por %p118, %p119
      %p121 = scmp.ne.s32.totalorder %s110, %s113
      %p122 = scmp.eq.s32.totalorder %s35, 1
      %p123 = por %p121, %p122
      %p124 = scmp.ne.s32.totalorder %s113, %s114
      %p125 = scmp.eq.s32.totalorder %s35, 0
      %p126 = por %p124, %p125
      %p127 = scmp.ne.s32.totalorder %s113, %s114
      %p128 = scmp.eq.s32.totalorder %s36, 1
      %p129 = por %p127, %p128
      %p131 = scmp.ne.s32.totalorder %s114, %s130
      %p132 = scmp.eq.s32.totalorder %s36, 0
      %p133 = por %p131, %p132
      %s135 = sadd.s32 %s134, 1
      %p138 = scmp.eq.s32.totalorder %s30, 1
      %p139 = scmp.ne.s32.totalorder %s134, %s136
      %p140 = scmp.eq.s32.totalorder %s30, 0
      %p141 = por %p139, %p140
      %p142 = scmp.ne.s32.totalorder %s134, %s136
      %p143 = scmp.eq.s32.totalorder %s35, 1
      %p144 = por %p142, %p143
      %p145 = scmp.ne.s32.totalorder %s136, %s137
      %p146 = scmp.eq.s32.totalorder %s35, 0
      %p147 = por %p145, %p146
      %p148 = scmp.ne.s32.totalorder %s136, %s137
      %p149 = scmp.eq.s32.totalorder %s36, 1
      %p150 = por %p148, %p149
      %p152 = scmp.ne.s32.totalorder %s137, %s151
      %p153 = scmp.eq.s32.totalorder %s36, 0
      %p154 = por %p152, %p153
      %s156 = sadd.s32 %s155, 1
      %p159 = scmp.eq.s32.totalorder %s30, 1
      %p160 = scmp.ne.s32.totalorder %s155, %s157
      %p161 = scmp.eq.s32.totalorder %s30, 0
      %p162 = por %p160, %p161
      %p163 = scmp.ne.s32.totalorder %s155, %s157
      %p164 = scmp.eq.s32.totalorder %s35, 1
      %p165 = por %p163, %p164
      %p166 = scmp.ne.s32.totalorder %s157, %s158
      %p167 = scmp.eq.s32.totalorder %s35, 0
      %p168 = por %p166, %p167
      %p169 = scmp.ne.s32.totalorder %s157, %s158
      %p170 = scmp.eq.s32.totalorder %s36, 1
      %p171 = por %p169, %p170
      %p173 = scmp.ne.s32.totalorder %s158, %s172
      %p174 = scmp.eq.s32.totalorder %s36, 0
      %p175 = por %p173, %p174
      %s177 = sadd.s32 %s176, 1
      %p180 = scmp.eq.s32.totalorder %s30, 1
      %p181 = scmp.ne.s32.totalorder %s176, %s178
      %p182 = scmp.eq.s32.totalorder %s30, 0
      %p183 = por %p181, %p182
      %p184 = scmp.ne.s32.totalorder %s176, %s178
      %p185 = scmp.eq.s32.totalorder %s35, 1
      %p186 = por %p184, %p185
      %p187 = scmp.ne.s32.totalorder %s178, %s179
      %p188 = scmp.eq.s32.totalorder %s35, 0
      %p189 = por %p187, %p188
      %p190 = scmp.ne.s32.totalorder %s178, %s179
      %p191 = scmp.eq.s32.totalorder %s36, 1
      %p192 = por %p190, %p191
      %p194 = scmp.ne.s32.totalorder %s179, %s193
      %p195 = scmp.eq.s32.totalorder %s36, 0
      %p196 = por %p194, %p195
      %s198 = sadd.s32 %s197, 1
      %p201 = scmp.eq.s32.totalorder %s30, 1
      %p202 = scmp.ne.s32.totalorder %s197, %s199
      %p203 = scmp.eq.s32.totalorder %s30, 0
      %p204 = por %p202, %p203
      %p205 = scmp.ne.s32.totalorder %s197, %s199
      %p206 = scmp.eq.s32.totalorder %s35, 1
      %p207 = por %p205, %p206
      %p208 = scmp.ne.s32.totalorder %s199, %s200
      %p209 = scmp.eq.s32.totalorder %s35, 0
      %p210 = por %p208, %p209
      %p211 = scmp.ne.s32.totalorder %s199, %s200
      %p212 = scmp.eq.s32.totalorder %s36, 1
      %p213 = por %p211, %p212
      %p215 = scmp.ne.s32.totalorder %s200, %s214
      %p216 = scmp.eq.s32.totalorder %s36, 0
      %p217 = por %p215, %p216
      %s219 = sadd.s32 %s218, 1
      %p222 = scmp.eq.s32.totalorder %s30, 1
      %p223 = scmp.ne.s32.totalorder %s218, %s220
      %p224 = scmp.eq.s32.totalorder %s30, 0
      %p225 = por %p223, %p224
      %p226 = scmp.ne.s32.totalorder %s218, %s220
      %p227 = scmp.eq.s32.totalorder %s35, 1
      %p228 = por %p226, %p227
      %p229 = scmp.ne.s32.totalorder %s220, %s221
      %p230 = scmp.eq.s32.totalorder %s35, 0
      %p231 = por %p229, %p230
      %p232 = scmp.ne.s32.totalorder %s220, %s221
      %p233 = scmp.eq.s32.totalorder %s36, 1
      %p234 = por %p232, %p233
      %p236 = scmp.ne.s32.totalorder %s221, %s235
      %p237 = scmp.eq.s32.totalorder %s36, 0
      %p238 = por %p236, %p237
      %s240 = sadd.s32 %s239, 1
      %p243 = scmp.eq.s32.totalorder %s30, 1
      %p244 = scmp.ne.s32.totalorder %s239, %s241
      %p245 = scmp.eq.s32.totalorder %s30, 0
      %p246 = por %p244, %p245
      %p247 = scmp.ne.s32.totalorder %s239, %s241
      %p248 = scmp.eq.s32.totalorder %s35, 1
      %p249 = por %p247, %p248
      %p250 = scmp.ne.s32.totalorder %s241, %s242
      %p251 = scmp.eq.s32.totalorder %s35, 0
      %p252 = por %p250, %p251
      %p253 = scmp.ne.s32.totalorder %s241, %s242
      %p254 = scmp.eq.s32.totalorder %s36, 1
      %p255 = por %p253, %p254
      %p257 = scmp.ne.s32.totalorder %s242, %s256
      %p258 = scmp.eq.s32.totalorder %s36, 0
      %p259 = por %p257, %p258
      %s261 = sadd.s32 %s260, 1
      %p264 = scmp.eq.s32.totalorder %s30, 1
      %p265 = scmp.ne.s32.totalorder %s260, %s262
      %p266 = scmp.eq.s32.totalorder %s30, 0
      %p267 = por %p265, %p266
      %p268 = scmp.ne.s32.totalorder %s260, %s262
      %p269 = scmp.eq.s32.totalorder %s35, 1
      %p270 = por %p268, %p269
      %p271 = scmp.ne.s32.totalorder %s262, %s263
      %p272 = scmp.eq.s32.totalorder %s35, 0
      %p273 = por %p271, %p272
      %p274 = scmp.ne.s32.totalorder %s262, %s263
      %p275 = scmp.eq.s32.totalorder %s36, 1
      %p276 = por %p274, %p275
      %p278 = scmp.ne.s32.totalorder %s263, %s277
      %p279 = scmp.eq.s32.totalorder %s36, 0
      %p280 = por %p278, %p279
      %s281 = ssub.s32 %s37, %s49
      %p282 = scmp.eq.s32.totalorder %s281, 0
      %s284 = sadd.s32 %s283, 1
      %s285 = scalar_select %p282, %s283, %s284
      %p288 = pneg %p282
      %p289 = scmp.eq.s32.totalorder %s30, 1
      %p290 = por %p288, %p289
      %p291 = scmp.ne.s32.totalorder %s283, %s286
      %p292 = scmp.eq.s32.totalorder %s30, 0
      %p293 = por %p291, %p292
      %p294 = scmp.ne.s32.totalorder %s283, %s286
      %p295 = scmp.eq.s32.totalorder %s35, 1
      %p296 = por %p294, %p295
      %p297 = scmp.ne.s32.totalorder %s286, %s287
      %p298 = scmp.eq.s32.totalorder %s35, 0
      %p299 = por %p297, %p298
      %p300 = scmp.ne.s32.totalorder %s286, %s287
      %p301 = scmp.eq.s32.totalorder %s36, 1
      %p302 = por %p300, %p301
      %p304 = scmp.ne.s32.totalorder %s287, %s303
      %p305 = scmp.eq.s32.totalorder %s36, 0
      %p306 = por %p304, %p305
      %p307 = scmp.le.s32.totalorder 1, %s30
      %p308 = scmp.lt.s32.totalorder %s30, 3
      %p309 = pnand %p307, %p308
      %p310 = pneg %p309
      // Predicated region
      $region9: #{tpu_custom_call.1} parent=5 // pred_check
        _
      $region10: #{tpu_custom_call.1} parent=5 // pred_check_branch
        %312 = sbr.rel (%p309) target = $region12
      $region11: #{tpu_custom_call.1} parent=5 // pred_region
        %s313 = ssub.s32 %s30, 1
        // Predicated region
        $region13: #{tpu_custom_call.1} parent=11 // pred_check
          %p314 = pneg %p147
        $region14: #{tpu_custom_call.1} parent=11 // pred_check_branch
          %316 = sbr.rel (%p314) target = $region16
        $region15: #{tpu_custom_call.1} parent=11 // pred_region
          %s318 = ssub.s32 64, 64
          %319 = vsyncadd [#allocation6], %s318
          %s321 = sshll.u32 %s3, 4
          %s322 = int_to_ptr.vmem [resolvable:$true] %s321
          %324 = dma.vmem_to_smem %s322, 64, [#allocation10], [#allocation6]
        $region16: #{tpu_custom_call.1} parent=11 // pred_fallthru
          _
        // Predicated region
        $region17: #{tpu_custom_call.1} parent=11 // pred_check
          %p325 = pneg %p168
        $region18: #{tpu_custom_call.1} parent=11 // pred_check_branch
          %327 = sbr.rel (%p325) target = $region20
        $region19: #{tpu_custom_call.1} parent=11 // pred_region
          %s329 = ssub.s32 64, 64
          %330 = vsyncadd [#allocation12], %s329
          %s332 = sshll.u32 %s4, 4
          %s333 = int_to_ptr.vmem [resolvable:$true] %s332
          %335 = dma.vmem_to_smem %s333, 64, [#allocation11], [#allocation12]
        $region20: #{tpu_custom_call.1} parent=11 // pred_fallthru
          _
        // Predicated region
        $region21: #{tpu_custom_call.1} parent=11 // pred_check
          %p336 = pneg %p189
        $region22: #{tpu_custom_call.1} parent=11 // pred_check_branch
          %338 = sbr.rel (%p336) target = $region24
        $region23: #{tpu_custom_call.1} parent=11 // pred_region
          %s340 = ssub.s32 16, 16
          %341 = vsyncadd [#allocation12], %s340
          %s343 = sshll.u32 %s5, 4
          %s344 = int_to_ptr.vmem [resolvable:$true] %s343
          %346 = dma.vmem_to_smem %s344, 16, [#allocation13], [#allocation12]
        $region24: #{tpu_custom_call.1} parent=11 // pred_fallthru
          _
        // Predicated region
        $region25: #{tpu_custom_call.1} parent=11 // pred_check
          %p347 = pneg %p210
        $region26: #{tpu_custom_call.1} parent=11 // pred_check_branch
          %349 = sbr.rel (%p347) target = $region28
        $region27: #{tpu_custom_call.1} parent=11 // pred_region
          %s351 = ssub.s32 64, 64
          %352 = vsyncadd [#allocation15], %s351
          %s354 = sshll.u32 %s6, 4
          %s355 = int_to_ptr.vmem [resolvable:$true] %s354
          %357 = dma.vmem_to_smem %s355, 64, [#allocation14], [#allocation15]
        $region28: #{tpu_custom_call.1} parent=11 // pred_fallthru
          _
        // Predicated region
        $region29: #{tpu_custom_call.1} parent=11 // pred_check
          %p358 = pneg %p231
        $region30: #{tpu_custom_call.1} parent=11 // pred_check_branch
          %360 = sbr.rel (%p358) target = $region32
        $region31: #{tpu_custom_call.1} parent=11 // pred_region
          %s362 = ssub.s32 16, 16
          %363 = vsyncadd [#allocation15], %s362
          %s365 = sshll.u32 %s7, 4
          %s366 = int_to_ptr.vmem [resolvable:$true] %s365
          %368 = dma.vmem_to_smem %s366, 16, [#allocation16], [#allocation15]
        $region32: #{tpu_custom_call.1} parent=11 // pred_fallthru
          _
        // Predicated region
        $region33: #{tpu_custom_call.1} parent=11 // pred_check
          %p369 = pneg %p252
        $region34: #{tpu_custom_call.1} parent=11 // pred_check_branch
          %371 = sbr.rel (%p369) target = $region36
        $region35: #{tpu_custom_call.1} parent=11 // pred_region
          %s373 = ssub.s32 16, 16
          %374 = vsyncadd [#allocation18], %s373
          %s376 = sshll.u32 %s8, 4
          %s377 = int_to_ptr.vmem [resolvable:$true] %s376
          %379 = dma.vmem_to_smem %s377, 16, [#allocation17], [#allocation18]
        $region36: #{tpu_custom_call.1} parent=11 // pred_fallthru
          _
        // Predicated region
        $region37: #{tpu_custom_call.1} parent=11 // pred_check
          %p380 = pneg %p273
        $region38: #{tpu_custom_call.1} parent=11 // pred_check_branch
          %382 = sbr.rel (%p380) target = $region40
        $region39: #{tpu_custom_call.1} parent=11 // pred_region
          _
        $region40: #{tpu_custom_call.1} parent=11 // pred_fallthru
          _
      $region12: #{tpu_custom_call.1} parent=5 // pred_fallthru
        _
      %p383 = scmp.lt.s32.totalorder %s30, 2
      // Predicated region
      $region41: #{tpu_custom_call.1} parent=5 // pred_check
        %p384 = pneg %p383
      $region42: #{tpu_custom_call.1} parent=5 // pred_check_branch
        %386 = sbr.rel (%p384) target = $region44
      $region43: #{tpu_custom_call.1} parent=5 // pred_region
        // Predicated region
        $region45: #{tpu_custom_call.1} parent=43 // pred_check
          %p387 = pneg %p64
        $region46: #{tpu_custom_call.1} parent=43 // pred_check_branch
          %389 = sbr.rel (%p387) target = $region48
        $region47: #{tpu_custom_call.1} parent=43 // pred_region
          %s390 = sand.u32 %s54, 1
          %s391 = scalar_lea.sflag [#allocation4], %s390
          %s392 = sand.u32 %s54, 1
          %s393 = smul.addr %s392, 8
          %s394 = scalar_lea.vmem [#allocation3], %s393
          %s396 = ssub.s32 128, 128
          %397 = vsyncadd %s391, %s396
          %s398 = smul.addr %s37, 4
          %s399 = sadd.s32 %s38, %s398
          %s400 = smul.addr %s399, 32
          %s401 = scalar_lea.hbm %s0, %s400
          %s402 = sshll.u32 %s394, 4
          %s403 = int_to_ptr.vmem [resolvable:$true] %s402
          %408 = dma.hbm_to_vmem [thread:$0]  %s401, 128, %s403, %s391, 32, 32, 2
        $region48: #{tpu_custom_call.1} parent=43 // pred_fallthru
          _
        // Predicated region
        $region49: #{tpu_custom_call.1} parent=43 // pred_check
          %p409 = pneg %p92
        $region50: #{tpu_custom_call.1} parent=43 // pred_check_branch
          %411 = sbr.rel (%p409) target = $region52
        $region51: #{tpu_custom_call.1} parent=43 // pred_region
          %s412 = sand.u32 %s30, 1
          %s413 = scalar_lea.sflag [#allocation8], %s412
          %s414 = sand.u32 %s82, 1
          %s415 = smul.addr %s414, 8
          %s416 = scalar_lea.vmem [#allocation7], %s415
          %s418 = ssub.s32 128, 128
          %419 = vsyncadd %s413, %s418
          %s420 = smul.addr %s37, 4
          %s421 = sadd.s32 %s38, %s420
          %s422 = smul.addr %s421, 32
          %s423 = scalar_lea.hbm %s1, %s422
          %s424 = sshll.u32 %s416, 4
          %s425 = int_to_ptr.vmem [resolvable:$true] %s424
          %430 = dma.hbm_to_vmem [thread:$0]  %s423, 128, %s425, %s413, 32, 32, 2
        $region52: #{tpu_custom_call.1} parent=43 // pred_fallthru
          _
        // Predicated region
        $region53: #{tpu_custom_call.1} parent=43 // pred_check
          %p431 = pneg %p120
        $region54: #{tpu_custom_call.1} parent=43 // pred_check_branch
          %433 = sbr.rel (%p431) target = $region56
        $region55: #{tpu_custom_call.1} parent=43 // pred_region
          %s434 = sand.u32 %s30, 1
          %s435 = scalar_lea.sflag [#allocation8], %s434
          %s436 = sand.u32 %s110, 1
          %s437 = smul.addr %s436, 8
          %s438 = scalar_lea.vmem [#allocation9], %s437
          %s440 = ssub.s32 128, 128
          %441 = vsyncadd %s435, %s440
          %s442 = smul.addr %s37, 4
          %s443 = sadd.s32 %s38, %s442
          %s444 = smul.addr %s443, 32
          %s445 = scalar_lea.hbm %s2, %s444
          %s446 = sshll.u32 %s438, 4
          %s447 = int_to_ptr.vmem [resolvable:$true] %s446
          %452 = dma.hbm_to_vmem [thread:$0]  %s445, 128, %s447, %s435, 32, 32, 2
        $region56: #{tpu_custom_call.1} parent=43 // pred_fallthru
          _
      $region44: #{tpu_custom_call.1} parent=5 // pred_fallthru
        _
      %p453 = scmp.le.s32.totalorder 1, %s30
      %p454 = scmp.lt.s32.totalorder %s30, 3
      %p455 = pnand %p453, %p454
      %p456 = pneg %p455
      // Predicated region
      $region57: #{tpu_custom_call.1} parent=5 // pred_check
        _
      $region58: #{tpu_custom_call.1} parent=5 // pred_check_branch
        %458 = sbr.rel (%p455) target = $region60
      $region59: #{tpu_custom_call.1} parent=5 // pred_region
        %s459 = ssub.s32 %s30, 1
        %s460 = sand.u32 %s57, 1
        %s461 = scalar_lea.sflag [#allocation4], %s460
        %s462 = sand.u32 %s57, 1
        %s463 = smul.addr %s462, 8
        %s464 = scalar_lea.vmem [#allocation3], %s463
        // Predicated region
        $region61: #{tpu_custom_call.1} parent=59 // pred_check
          %p465 = pneg %p70
        $region62: #{tpu_custom_call.1} parent=59 // pred_check_branch
          %467 = sbr.rel (%p465) target = $region64
        $region63: #{tpu_custom_call.1} parent=59 // pred_region
          %468 = dma.done %s461, 128
        $region64: #{tpu_custom_call.1} parent=59 // pred_fallthru
          _
        %s469 = sand.u32 %s35, 1
        %s470 = scalar_lea.sflag [#allocation8], %s469
        %s471 = sand.u32 %s85, 1
        %s472 = smul.addr %s471, 8
        %s473 = scalar_lea.vmem [#allocation7], %s472
        // Predicated region
        $region65: #{tpu_custom_call.1} parent=59 // pred_check
          %p474 = pneg %p98
        $region66: #{tpu_custom_call.1} parent=59 // pred_check_branch
          %476 = sbr.rel (%p474) target = $region68
        $region67: #{tpu_custom_call.1} parent=59 // pred_region
          %477 = dma.done %s470, 128
        $region68: #{tpu_custom_call.1} parent=59 // pred_fallthru
          _
        %s478 = sand.u32 %s35, 1
        %s479 = scalar_lea.sflag [#allocation8], %s478
        %s480 = sand.u32 %s113, 1
        %s481 = smul.addr %s480, 8
        %s482 = scalar_lea.vmem [#allocation9], %s481
        // Predicated region
        $region69: #{tpu_custom_call.1} parent=59 // pred_check
          %p483 = pneg %p126
        $region70: #{tpu_custom_call.1} parent=59 // pred_check_branch
          %485 = sbr.rel (%p483) target = $region72
        $region71: #{tpu_custom_call.1} parent=59 // pred_region
          %486 = dma.done %s479, 128
        $region72: #{tpu_custom_call.1} parent=59 // pred_fallthru
          _
        // Predicated region
        $region73: #{tpu_custom_call.1} parent=59 // pred_check
          %p487 = pneg %p147
        $region74: #{tpu_custom_call.1} parent=59 // pred_check_branch
          %489 = sbr.rel (%p487) target = $region76
        $region75: #{tpu_custom_call.1} parent=59 // pred_region
          %490 = dma.done [#allocation6], 64
        $region76: #{tpu_custom_call.1} parent=59 // pred_fallthru
          _
        // Predicated region
        $region77: #{tpu_custom_call.1} parent=59 // pred_check
          %p491 = pneg %p168
        $region78: #{tpu_custom_call.1} parent=59 // pred_check_branch
          %493 = sbr.rel (%p491) target = $region80
        $region79: #{tpu_custom_call.1} parent=59 // pred_region
          %494 = dma.done [#allocation12], 64
        $region80: #{tpu_custom_call.1} parent=59 // pred_fallthru
          _
        // Predicated region
        $region81: #{tpu_custom_call.1} parent=59 // pred_check
          %p495 = pneg %p189
        $region82: #{tpu_custom_call.1} parent=59 // pred_check_branch
          %497 = sbr.rel (%p495) target = $region84
        $region83: #{tpu_custom_call.1} parent=59 // pred_region
          %498 = dma.done [#allocation12], 16
        $region84: #{tpu_custom_call.1} parent=59 // pred_fallthru
          _
        // Predicated region
        $region85: #{tpu_custom_call.1} parent=59 // pred_check
          %p499 = pneg %p210
        $region86: #{tpu_custom_call.1} parent=59 // pred_check_branch
          %501 = sbr.rel (%p499) target = $region88
        $region87: #{tpu_custom_call.1} parent=59 // pred_region
          %502 = dma.done [#allocation15], 64
        $region88: #{tpu_custom_call.1} parent=59 // pred_fallthru
          _
        // Predicated region
        $region89: #{tpu_custom_call.1} parent=59 // pred_check
          %p503 = pneg %p231
        $region90: #{tpu_custom_call.1} parent=59 // pred_check_branch
          %505 = sbr.rel (%p503) target = $region92
        $region91: #{tpu_custom_call.1} parent=59 // pred_region
          %506 = dma.done [#allocation15], 16
        $region92: #{tpu_custom_call.1} parent=59 // pred_fallthru
          _
        // Predicated region
        $region93: #{tpu_custom_call.1} parent=59 // pred_check
          %p507 = pneg %p252
        $region94: #{tpu_custom_call.1} parent=59 // pred_check_branch
          %509 = sbr.rel (%p507) target = $region96
        $region95: #{tpu_custom_call.1} parent=59 // pred_region
          %510 = dma.done [#allocation18], 16
        $region96: #{tpu_custom_call.1} parent=59 // pred_fallthru
          _
        %511 = sfence
        %s512 = sand.u32 %s57, 1
        %s513 = scalar_lea.sflag [#allocation4], %s512
        %s514 = sand.u32 %s57, 1
        %s515 = smul.addr %s514, 8
        %s516 = scalar_lea.vmem [#allocation3], %s515
        %p517 = pneg %p70
        %p518 = pneg %p67
        %s519 = sand.u32 %s35, 1
        %s520 = scalar_lea.sflag [#allocation8], %s519
        %s521 = sand.u32 %s85, 1
        %s522 = smul.addr %s521, 8
        %s523 = scalar_lea.vmem [#allocation7], %s522
        %p524 = pneg %p98
        %p525 = pneg %p95
        %s526 = sand.u32 %s35, 1
        %s527 = scalar_lea.sflag [#allocation8], %s526
        %s528 = sand.u32 %s113, 1
        %s529 = smul.addr %s528, 8
        %s530 = scalar_lea.vmem [#allocation9], %s529
        %p531 = pneg %p126
        %p532 = pneg %p123
        %p533 = pneg %p147
        %p534 = pneg %p144
        %p535 = pneg %p168
        %p536 = pneg %p165
        %p537 = pneg %p189
        %p538 = pneg %p186
        %p539 = pneg %p210
        %p540 = pneg %p207
        %p541 = pneg %p231
        %p542 = pneg %p228
        %p543 = pneg %p252
        %p544 = pneg %p249
        %p545 = pneg %p273
        %p546 = pneg %p270
        %p547 = pneg %p299
        %p548 = pneg %p296
        %s549 = sand.u32 %s286, 1
        %s550 = scalar_lea.sflag [#allocation5], %s549
        %s551 = sand.u32 %s286, 1
        %s552 = smul.addr %s551, 2
        %s553 = scalar_lea.vmem [#allocation19], %s552
        %p554 = scmp.eq.s32.totalorder %s40, 0
        // Predicated region
        $region97: #{tpu_custom_call.1} parent=59 // pred_check
          %p555 = pneg %p554
        $region98: #{tpu_custom_call.1} parent=59 // pred_check_branch
          %557 = sbr.rel (%p555) target = $region100
        $region99: #{tpu_custom_call.1} parent=59 // pred_region
          %558 = vst [vmem:[%s553] sm:$0x3] 0.0
        $region100: #{tpu_custom_call.1} parent=59 // pred_fallthru
          _
        %v559 = vld [vmem:[%s464] sm:$0x3]
        %s560 = scalar_lea.vmem %s464, 2 [#allocation3]
        %v561 = vld [vmem:[%s560] sm:$0x3]
        %s562 = scalar_lea.vmem %s464, 4 [#allocation3]
        %v563 = vld [vmem:[%s562] sm:$0x3]
        %s564 = scalar_lea.vmem %s464, 6 [#allocation3]
        %v565 = vld [vmem:[%s564] sm:$0x3]
        %v566 = vld [vmem:[%s473] sm:$0x3]
        %s567 = scalar_lea.vmem %s473, 2 [#allocation7]
        %v568 = vld [vmem:[%s567] sm:$0x3]
        %s569 = scalar_lea.vmem %s473, 4 [#allocation7]
        %v570 = vld [vmem:[%s569] sm:$0x3]
        %s571 = scalar_lea.vmem %s473, 6 [#allocation7]
        %v572 = vld [vmem:[%s571] sm:$0x3]
        %v573 = vld [vmem:[%s482] sm:$0x3]
        %s574 = scalar_lea.vmem %s482, 2 [#allocation9]
        %v575 = vld [vmem:[%s574] sm:$0x3]
        %s576 = scalar_lea.vmem %s482, 4 [#allocation9]
        %v577 = vld [vmem:[%s576] sm:$0x3]
        %s578 = scalar_lea.vmem %s482, 6 [#allocation9]
        %v579 = vld [vmem:[%s578] sm:$0x3]
        %s580 = sld [smem:[#allocation10]]
        %v581 = vstv %s580
        %v582 = vmul.f32 %v581, %v559
        %s583 = sld [smem:[#allocation10 + $0x1]]
        %v584 = vstv %s583
        %v585 = vmul.f32 %v584, %v561
        %v586 = vadd.f32 %v582, %v585
        %s587 = sld [smem:[#allocation10 + $0x2]]
        %v588 = vstv %s587
        %v589 = vmul.f32 %v588, %v563
        %v590 = vadd.f32 %v586, %v589
        %s591 = sld [smem:[#allocation10 + $0x3]]
        %v592 = vstv %s591
        %v593 = vmul.f32 %v592, %v565
        %v594 = vadd.f32 %v590, %v593
        %s595 = sld [smem:[#allocation13]]
        %v596 = vstv %s595
        %v597 = vadd.f32 %v594, %v596
        %s598 = sld [smem:[#allocation10 + $0x80]]
        %v599 = vstv %s598
        %v600 = vmul.f32 %v599, %v559
        %s601 = sld [smem:[#allocation10 + $0x81]]
        %v602 = vstv %s601
        %v603 = vmul.f32 %v602, %v561
        %v604 = vadd.f32 %v600, %v603
        %s605 = sld [smem:[#allocation10 + $0x82]]
        %v606 = vstv %s605
        %v607 = vmul.f32 %v606, %v563
        %v608 = vadd.f32 %v604, %v607
        %s609 = sld [smem:[#allocation10 + $0x83]]
        %v610 = vstv %s609
        %v611 = vmul.f32 %v610, %v565
        %v612 = vadd.f32 %v608, %v611
        %s613 = sld [smem:[#allocation13 + $0x1]]
        %v614 = vstv %s613
        %v615 = vadd.f32 %v612, %v614
        %s616 = sld [smem:[#allocation10 + $0x100]]
        %v617 = vstv %s616
        %v618 = vmul.f32 %v617, %v559
        %s619 = sld [smem:[#allocation10 + $0x101]]
        %v620 = vstv %s619
        %v621 = vmul.f32 %v620, %v561
        %v622 = vadd.f32 %v618, %v621
        %s623 = sld [smem:[#allocation10 + $0x102]]
        %v624 = vstv %s623
        %v625 = vmul.f32 %v624, %v563
        %v626 = vadd.f32 %v622, %v625
        %s627 = sld [smem:[#allocation10 + $0x103]]
        %v628 = vstv %s627
        %v629 = vmul.f32 %v628, %v565
        %v630 = vadd.f32 %v626, %v629
        %s631 = sld [smem:[#allocation13 + $0x2]]
        %v632 = vstv %s631
        %v633 = vadd.f32 %v630, %v632
        %s634 = sld [smem:[#allocation10 + $0x180]]
        %v635 = vstv %s634
        %v636 = vmul.f32 %v635, %v559
        %s637 = sld [smem:[#allocation10 + $0x181]]
        %v638 = vstv %s637
        %v639 = vmul.f32 %v638, %v561
        %v640 = vadd.f32 %v636, %v639
        %s641 = sld [smem:[#allocation10 + $0x182]]
        %v642 = vstv %s641
        %v643 = vmul.f32 %v642, %v563
        %v644 = vadd.f32 %v640, %v643
        %s645 = sld [smem:[#allocation10 + $0x183]]
        %v646 = vstv %s645
        %v647 = vmul.f32 %v646, %v565
        %v648 = vadd.f32 %v644, %v647
        %s649 = sld [smem:[#allocation13 + $0x3]]
        %v650 = vstv %s649
        %v651 = vadd.f32 %v648, %v650
        %s652 = sld [smem:[#allocation2]]
        %s653 = sld [smem:[#allocation11]]
        %v654 = vstv %s653
        %v655 = vmul.f32 %v654, %v566
        %s656 = sld [smem:[#allocation11 + $0x1]]
        %v657 = vstv %s656
        %v658 = vmul.f32 %v657, %v568
        %v659 = vadd.f32 %v655, %v658
        %s660 = sld [smem:[#allocation11 + $0x2]]
        %v661 = vstv %s660
        %v662 = vmul.f32 %v661, %v570
        %v663 = vadd.f32 %v659, %v662
        %s664 = sld [smem:[#allocation11 + $0x3]]
        %v665 = vstv %s664
        %v666 = vmul.f32 %v665, %v572
        %v667 = vadd.f32 %v663, %v666
        %s668 = sld [smem:[#allocation11 + $0x80]]
        %v669 = vstv %s668
        %v670 = vmul.f32 %v669, %v566
        %s671 = sld [smem:[#allocation11 + $0x81]]
        %v672 = vstv %s671
        %v673 = vmul.f32 %v672, %v568
        %v674 = vadd.f32 %v670, %v673
        %s675 = sld [smem:[#allocation11 + $0x82]]
        %v676 = vstv %s675
        %v677 = vmul.f32 %v676, %v570
        %v678 = vadd.f32 %v674, %v677
        %s679 = sld [smem:[#allocation11 + $0x83]]
        %v680 = vstv %s679
        %v681 = vmul.f32 %v680, %v572
        %v682 = vadd.f32 %v678, %v681
        %s683 = sld [smem:[#allocation11 + $0x100]]
        %v684 = vstv %s683
        %v685 = vmul.f32 %v684, %v566
        %s686 = sld [smem:[#allocation11 + $0x101]]
        %v687 = vstv %s686
        %v688 = vmul.f32 %v687, %v568
        %v689 = vadd.f32 %v685, %v688
        %s690 = sld [smem:[#allocation11 + $0x102]]
        %v691 = vstv %s690
        %v692 = vmul.f32 %v691, %v570
        %v693 = vadd.f32 %v689, %v692
        %s694 = sld [smem:[#allocation11 + $0x103]]
        %v695 = vstv %s694
        %v696 = vmul.f32 %v695, %v572
        %v697 = vadd.f32 %v693, %v696
        %s698 = sld [smem:[#allocation11 + $0x180]]
        %v699 = vstv %s698
        %v700 = vmul.f32 %v699, %v566
        %s701 = sld [smem:[#allocation11 + $0x181]]
        %v702 = vstv %s701
        %v703 = vmul.f32 %v702, %v568
        %v704 = vadd.f32 %v700, %v703
        %s705 = sld [smem:[#allocation11 + $0x182]]
        %v706 = vstv %s705
        %v707 = vmul.f32 %v706, %v570
        %v708 = vadd.f32 %v704, %v707
        %s709 = sld [smem:[#allocation11 + $0x183]]
        %v710 = vstv %s709
        %v711 = vmul.f32 %v710, %v572
        %v712 = vadd.f32 %v708, %v711
        %v713 = vadd.f32 %v597, %v667
        %v714 = vmax.f32 %v713, 0.0
        %v715 = vadd.f32 %v615, %v682
        %v716 = vmax.f32 %v715, 0.0
        %v717 = vadd.f32 %v633, %v697
        %v718 = vmax.f32 %v717, 0.0
        %v719 = vadd.f32 %v651, %v712
        %v720 = vmax.f32 %v719, 0.0
        %s721 = sld [smem:[#allocation14]]
        %v722 = vstv %s721
        %v723 = vmul.f32 %v722, %v714
        %s724 = sld [smem:[#allocation14 + $0x1]]
        %v725 = vstv %s724
        %v726 = vmul.f32 %v725, %v716
        %v727 = vadd.f32 %v723, %v726
        %s728 = sld [smem:[#allocation14 + $0x2]]
        %v729 = vstv %s728
        %v730 = vmul.f32 %v729, %v718
        %v731 = vadd.f32 %v727, %v730
        %s732 = sld [smem:[#allocation14 + $0x3]]
        %v733 = vstv %s732
        %v734 = vmul.f32 %v733, %v720
        %v735 = vadd.f32 %v731, %v734
        %s736 = sld [smem:[#allocation16]]
        %v737 = vstv %s736
        %v738 = vadd.f32 %v735, %v737
        %s739 = sld [smem:[#allocation14 + $0x80]]
        %v740 = vstv %s739
        %v741 = vmul.f32 %v740, %v714
        %s742 = sld [smem:[#allocation14 + $0x81]]
        %v743 = vstv %s742
        %v744 = vmul.f32 %v743, %v716
        %v745 = vadd.f32 %v741, %v744
        %s746 = sld [smem:[#allocation14 + $0x82]]
        %v747 = vstv %s746
        %v748 = vmul.f32 %v747, %v718
        %v749 = vadd.f32 %v745, %v748
        %s750 = sld [smem:[#allocation14 + $0x83]]
        %v751 = vstv %s750
        %v752 = vmul.f32 %v751, %v720
        %v753 = vadd.f32 %v749, %v752
        %s754 = sld [smem:[#allocation16 + $0x1]]
        %v755 = vstv %s754
        %v756 = vadd.f32 %v753, %v755
        %s757 = sld [smem:[#allocation14 + $0x100]]
        %v758 = vstv %s757
        %v759 = vmul.f32 %v758, %v714
        %s760 = sld [smem:[#allocation14 + $0x101]]
        %v761 = vstv %s760
        %v762 = vmul.f32 %v761, %v716
        %v763 = vadd.f32 %v759, %v762
        %s764 = sld [smem:[#allocation14 + $0x102]]
        %v765 = vstv %s764
        %v766 = vmul.f32 %v765, %v718
        %v767 = vadd.f32 %v763, %v766
        %s768 = sld [smem:[#allocation14 + $0x103]]
        %v769 = vstv %s768
        %v770 = vmul.f32 %v769, %v720
        %v771 = vadd.f32 %v767, %v770
        %s772 = sld [smem:[#allocation16 + $0x2]]
        %v773 = vstv %s772
        %v774 = vadd.f32 %v771, %v773
        %s775 = sld [smem:[#allocation14 + $0x180]]
        %v776 = vstv %s775
        %v777 = vmul.f32 %v776, %v714
        %s778 = sld [smem:[#allocation14 + $0x181]]
        %v779 = vstv %s778
        %v780 = vmul.f32 %v779, %v716
        %v781 = vadd.f32 %v777, %v780
        %s782 = sld [smem:[#allocation14 + $0x182]]
        %v783 = vstv %s782
        %v784 = vmul.f32 %v783, %v718
        %v785 = vadd.f32 %v781, %v784
        %s786 = sld [smem:[#allocation14 + $0x183]]
        %v787 = vstv %s786
        %v788 = vmul.f32 %v787, %v720
        %v789 = vadd.f32 %v785, %v788
        %s790 = sld [smem:[#allocation16 + $0x3]]
        %v791 = vstv %s790
        %v792 = vadd.f32 %v789, %v791
        %v793 = vmax.f32 %v738, 0.0
        %v794 = vmax.f32 %v756, 0.0
        %v795 = vmax.f32 %v774, 0.0
        %v796 = vmax.f32 %v792, 0.0
        %s797 = sld [smem:[#allocation17]]
        %v798 = vstv %s797
        %v799 = vmul.f32 %v798, %v793
        %s800 = sld [smem:[#allocation17 + $0x1]]
        %v801 = vstv %s800
        %v802 = vmul.f32 %v801, %v794
        %v803 = vadd.f32 %v799, %v802
        %s804 = sld [smem:[#allocation17 + $0x2]]
        %v805 = vstv %s804
        %v806 = vmul.f32 %v805, %v795
        %v807 = vadd.f32 %v803, %v806
        %s808 = sld [smem:[#allocation17 + $0x3]]
        %v809 = vstv %s808
        %v810 = vmul.f32 %v809, %v796
        %v811 = vadd.f32 %v807, %v810
        %v812 = vstv %s652
        %v813 = vadd.f32 %v811, %v812
        %v814 = vmul.f32 %v654, %v573
        %v815 = vmul.f32 %v657, %v575
        %v816 = vadd.f32 %v814, %v815
        %v817 = vmul.f32 %v661, %v577
        %v818 = vadd.f32 %v816, %v817
        %v819 = vmul.f32 %v665, %v579
        %v820 = vadd.f32 %v818, %v819
        %v821 = vmul.f32 %v669, %v573
        %v822 = vmul.f32 %v672, %v575
        %v823 = vadd.f32 %v821, %v822
        %v824 = vmul.f32 %v676, %v577
        %v825 = vadd.f32 %v823, %v824
        %v826 = vmul.f32 %v680, %v579
        %v827 = vadd.f32 %v825, %v826
        %v828 = vmul.f32 %v684, %v573
        %v829 = vmul.f32 %v687, %v575
        %v830 = vadd.f32 %v828, %v829
        %v831 = vmul.f32 %v691, %v577
        %v832 = vadd.f32 %v830, %v831
        %v833 = vmul.f32 %v695, %v579
        %v834 = vadd.f32 %v832, %v833
        %v835 = vmul.f32 %v699, %v573
        %v836 = vmul.f32 %v702, %v575
        %v837 = vadd.f32 %v835, %v836
        %v838 = vmul.f32 %v706, %v577
        %v839 = vadd.f32 %v837, %v838
        %v840 = vmul.f32 %v710, %v579
        %v841 = vadd.f32 %v839, %v840
        %v842 = vadd.f32 %v597, %v820
        %v843 = vmax.f32 %v842, 0.0
        %v844 = vadd.f32 %v615, %v827
        %v845 = vmax.f32 %v844, 0.0
        %v846 = vadd.f32 %v633, %v834
        %v847 = vmax.f32 %v846, 0.0
        %v848 = vadd.f32 %v651, %v841
        %v849 = vmax.f32 %v848, 0.0
        %v850 = vmul.f32 %v722, %v843
        %v851 = vmul.f32 %v725, %v845
        %v852 = vadd.f32 %v850, %v851
        %v853 = vmul.f32 %v729, %v847
        %v854 = vadd.f32 %v852, %v853
        %v855 = vmul.f32 %v733, %v849
        %v856 = vadd.f32 %v854, %v855
        %v857 = vadd.f32 %v856, %v737
        %v858 = vmul.f32 %v740, %v843
        %v859 = vmul.f32 %v743, %v845
        %v860 = vadd.f32 %v858, %v859
        %v861 = vmul.f32 %v747, %v847
        %v862 = vadd.f32 %v860, %v861
        %v863 = vmul.f32 %v751, %v849
        %v864 = vadd.f32 %v862, %v863
        %v865 = vadd.f32 %v864, %v755
        %v866 = vmul.f32 %v758, %v843
        %v867 = vmul.f32 %v761, %v845
        %v868 = vadd.f32 %v866, %v867
        %v869 = vmul.f32 %v765, %v847
        %v870 = vadd.f32 %v868, %v869
        %v871 = vmul.f32 %v769, %v849
        %v872 = vadd.f32 %v870, %v871
        %v873 = vadd.f32 %v872, %v773
        %v874 = vmul.f32 %v776, %v843
        %v875 = vmul.f32 %v779, %v845
        %v876 = vadd.f32 %v874, %v875
        %v877 = vmul.f32 %v783, %v847
        %v878 = vadd.f32 %v876, %v877
        %v879 = vmul.f32 %v787, %v849
        %v880 = vadd.f32 %v878, %v879
        %v881 = vadd.f32 %v880, %v791
        %v882 = vmax.f32 %v857, 0.0
        %v883 = vmax.f32 %v865, 0.0
        %v884 = vmax.f32 %v873, 0.0
        %v885 = vmax.f32 %v881, 0.0
        %v886 = vmul.f32 %v798, %v882
        %v887 = vmul.f32 %v801, %v883
        %v888 = vadd.f32 %v886, %v887
        %v889 = vmul.f32 %v805, %v884
        %v890 = vadd.f32 %v888, %v889
        %v891 = vmul.f32 %v809, %v885
        %v892 = vadd.f32 %v890, %v891
        %v893 = vadd.f32 %v892, %v812
        %v894 = vsub.f32 0.0, %v893
        %v895 = vand.u32 2147483647, %v894
        %v896 = vsub.f32 0.0, %v895
        %v897 = vmul.f32 %v896, 1.442695
        %v898 = vpow.pop %v897
        %v899 = vadd.f32 %v898, 1.0
        %v900 = vlog2.pop %v899
        %v901 = vmul.f32 %v900, 0.6931472
        %v902 = vmul.f32 -0.5, %v898
        %v903 = vadd.f32 %v902, 1.0
        %v904 = vmul.f32 %v903, %v898
        %v905 = vand.u32 2147483647, %v898
        %vm906 = vcmp.lt.f32.partialorder %v905, 0.0004427343
        %v907 = vsel %vm906, %v904, %v901
        %v908 = vmax.f32 %v894, 0.0
        %v909 = vadd.f32 %v907, %v908
        %v910 = vand.u32 2147483647, %v813
        %v911 = vsub.f32 0.0, %v910
        %v912 = vmul.f32 %v911, 1.442695
        %v913 = vpow.pop %v912
        %v914 = vadd.f32 %v913, 1.0
        %v915 = vlog2.pop %v914
        %v916 = vmul.f32 %v915, 0.6931472
        %v917 = vmul.f32 -0.5, %v913
        %v918 = vadd.f32 %v917, 1.0
        %v919 = vmul.f32 %v918, %v913
        %v920 = vand.u32 2147483647, %v913
        %vm921 = vcmp.lt.f32.partialorder %v920, 0.0004427343
        %v922 = vsel %vm921, %v919, %v916
        %v923 = vmax.f32 %v813, 0.0
        %v924 = vadd.f32 %v922, %v923
        %v925 = vmul.f32 %v924, 0.1
        %v926 = vadd.f32 %v909, %v925
        %v927 = vld [vmem:[%s553] sm:$0x3]
        %v928 = vadd.f32 %v927, %v926
        %929 = vst [vmem:[%s553] sm:$0x3] %v928
        %s930 = sand.u32 %s286, 1
        %s931 = scalar_lea.sflag [#allocation5], %s930
        %s932 = sand.u32 %s286, 1
        %s933 = smul.addr %s932, 2
        %s934 = scalar_lea.vmem [#allocation19], %s933
        // Predicated region
        $region101: #{tpu_custom_call.1} parent=59 // pred_check
          %p935 = pneg %p296
        $region102: #{tpu_custom_call.1} parent=59 // pred_check_branch
          %937 = sbr.rel (%p935) target = $region104
        $region103: #{tpu_custom_call.1} parent=59 // pred_region
          %s939 = ssub.s32 32, 32
          %940 = vsyncadd %s931, %s939
          %s941 = smul.addr %s39, 32
          %s942 = scalar_lea.hbm %s10, %s941
          %s944 = sshll.u32 %s934, 4
          %s945 = int_to_ptr.vmem [resolvable:$true] %s944
          %947 = dma.vmem_to_hbm [thread:$0]  %s945, 32, %s942, %s931
        $region104: #{tpu_custom_call.1} parent=59 // pred_fallthru
          _
      $region60: #{tpu_custom_call.1} parent=5 // pred_fallthru
        _
      %p948 = scmp.le.s32.totalorder 2, %s30
      // Predicated region
      $region105: #{tpu_custom_call.1} parent=5 // pred_check
        %p949 = pneg %p948
      $region106: #{tpu_custom_call.1} parent=5 // pred_check_branch
        %951 = sbr.rel (%p949) target = $region108
      $region107: #{tpu_custom_call.1} parent=5 // pred_region
        %s952 = ssub.s32 %s30, 2
        // Predicated region
        $region109: #{tpu_custom_call.1} parent=107 // pred_check
          %p953 = pneg %p302
        $region110: #{tpu_custom_call.1} parent=107 // pred_check_branch
          %955 = sbr.rel (%p953) target = $region112
        $region111: #{tpu_custom_call.1} parent=107 // pred_region
          %s956 = sand.u32 %s287, 1
          %s957 = scalar_lea.sflag [#allocation5], %s956
          %s958 = sand.u32 %s287, 1
          %s959 = smul.addr %s958, 2
          %s960 = scalar_lea.vmem [#allocation19], %s959
          %961 = dma.done %s957, 32
        $region112: #{tpu_custom_call.1} parent=107 // pred_fallthru
          _
      $region108: #{tpu_custom_call.1} parent=5 // pred_fallthru
        _
    $region6: #{tpu_custom_call.1} parent=1 // loop_footer
      %s34 = sadd.s32 1, %s30
    $region7: #{tpu_custom_call.1} parent=1 // loop_footer_branch
      %29 = sbr.rel target = $region3
    $region8: #{tpu_custom_call.1} parent=1 // loop_exit
      _
    %962 = vsyncpa [#allocation4], 1
    %s963 = scalar_lea.sflag [#allocation4], 1
    %964 = vsyncpa %s963, 1
    %965 = vsyncpa [#allocation8], 1
    %s966 = scalar_lea.sflag [#allocation8], 1
    %967 = vsyncpa %s966, 1
    %968 = vsyncpa [#allocation5], 1
    %s969 = scalar_lea.sflag [#allocation5], 1
    %970 = vsyncpa %s969, 1
    %971 = vsyncpa [#allocation6], 1
    %s972 = scalar_lea.sflag [#allocation6], 1
    %973 = vsyncpa %s972, 1
    %974 = vsyncpa [#allocation12], 1
    %975 = vsyncpa [#allocation15], 1
    %976 = vsyncpa [#allocation18], 1

</llo_original>
